<compile_context>
chip_gen: v6e
topology: v6e:2x2x1
jax: 0.10.0
libtpu: 0.0.40
codegen_flags: <defaults>
</compile_context>

<pallas_src>
import functools
import math

import jax
import jax.numpy as jnp
from jax import lax
from jax.experimental import pallas as pl
from jax.experimental.pallas import tpu as pltpu

# Scoped-VMEM cap: 48 MiB leaves headroom on v7x (64 MiB physical per
# TensorCore) and is well under v5e/v6e's 128 MiB.  Demo shapes use ~KBs.
_VMEM_LIMIT_BYTES = 48 * 1024 * 1024


# ---------------------------------------------------------------------------
# Tile-size helpers (never default to full S at realistic shapes)
# ---------------------------------------------------------------------------
def _pick_seq_tile(dim, target=256):
    """Sublane-dim tile: divides `dim`, multiple of 8, <= target; else full."""
    if dim <= target:
        return dim
    t = math.gcd(dim, target)
    return t if t % 8 == 0 else dim


def _pick_lane_tile(dim, target=256):
    """Lane-dim tile: multiple of 128 dividing `dim`, <= target; else full."""
    if dim <= target or dim % 128 != 0:
        return dim
    return 256 if (dim % 256 == 0 and target >= 256) else 128


# ---------------------------------------------------------------------------
# Kernel 1: fused QKV projection, N-tiled per (tensor, head)
# ---------------------------------------------------------------------------
def _make_qkv_proj_kernel(compute_dtype):
    def kernel(x_ref, w_ref, b_ref, o_ref):
        # x: (Ts, D)   w: (D, hd)   b: (1, hd)   o: (Ts, hd)
        acc = jnp.dot(x_ref[...].astype(compute_dtype),
                      w_ref[...].astype(compute_dtype),
                      preferred_element_type=jnp.float32)
        o_ref[...] = (acc + b_ref[...].astype(jnp.float32)).astype(o_ref.dtype)
    return kernel


def qkv_projection(x, wqkv, bqkv, *, compute_dtype, seq_block=None):
    """x: [B,S,D], wqkv: [3,H,D,hd], bqkv: [3,H,1,hd] -> qkv: [B,3,H,S,hd]."""
    B, S, D = x.shape
    _, H, _, hd = wqkv.shape
    ts = seq_block or _pick_seq_tile(S)
    assert S % ts == 0

    # (t, h) outermost so the (D, hd) weight slice stays resident across the
    # inner (B, S-tile) loop (weight streamed from HBM exactly once).
    grid = (3, H, B, S // ts)
    return pl.pallas_call(
        _make_qkv_proj_kernel(compute_dtype),
        out_shape=jax.ShapeDtypeStruct((B, 3, H, S, hd), x.dtype),
        grid_spec=pltpu.PrefetchScalarGridSpec(
            num_scalar_prefetch=0,
            grid=grid,
            in_specs=[
                pl.BlockSpec((None, ts, D), lambda t, h, b, si: (b, si, 0)),
                pl.BlockSpec((None, None, D, hd),
                             lambda t, h, b, si: (t, h, 0, 0)),
                pl.BlockSpec((None, None, 1, hd),
                             lambda t, h, b, si: (t, h, 0, 0)),
            ],
            out_specs=pl.BlockSpec((None, None, None, ts, hd),
                                   lambda t, h, b, si: (b, t, h, si, 0)),
        ),
        compiler_params=pltpu.CompilerParams(
            dimension_semantics=("parallel",) * 4,
            vmem_limit_bytes=_VMEM_LIMIT_BYTES),
    )(x, wqkv, bqkv)


# ---------------------------------------------------------------------------
# Kernel 2: flash attention (online softmax, KV-tiled)
# ---------------------------------------------------------------------------
def _make_flash_attn_kernel(scale, compute_dtype):
    def kernel(q_ref, k_ref, v_ref, o_ref, m_ref, l_ref, acc_ref):
        ki = pl.program_id(3)

        @pl.when(ki == 0)
        def _():
            m_ref[...] = jnp.full(m_ref.shape, -jnp.inf, m_ref.dtype)
            l_ref[...] = jnp.zeros(l_ref.shape, l_ref.dtype)
            acc_ref[...] = jnp.zeros(acc_ref.shape, acc_ref.dtype)

        # 1/sqrt(hd) folded into q (Tq*hd elements) instead of the scores.
        q = (q_ref[...].astype(jnp.float32) * scale).astype(compute_dtype)
        k = k_ref[...].astype(compute_dtype)
        s = lax.dot_general(q, k, (((1,), (1,)), ((), ())),
                            preferred_element_type=jnp.float32)   # (Tq, Tk)
        # TODO(synk): optional attention mask would be applied to `s` here
        # (per KV tile, before the running-max update).

        m_prev = m_ref[...]
        m_new = jnp.maximum(m_prev, jnp.max(s, axis=-1, keepdims=True))
        alpha = jnp.exp(m_prev - m_new)
        p = jnp.exp(s - m_new)
        l_ref[...] = alpha * l_ref[...] + jnp.sum(p, axis=-1, keepdims=True)
        acc_ref[...] = alpha * acc_ref[...] + jnp.dot(
            p.astype(compute_dtype), v_ref[...].astype(compute_dtype),
            preferred_element_type=jnp.float32)
        m_ref[...] = m_new

        @pl.when(ki == pl.num_programs(3) - 1)
        def _():
            # Normalization applied once to the (Tq, hd) accumulator.
            o_ref[...] = (acc_ref[...]
                          * pl.reciprocal(l_ref[...], approx=True)
                          ).astype(o_ref.dtype)
    return kernel


def flash_attention(qkv, *, compute_dtype, q_block=None, kv_block=None):
    """qkv: [B,3,H,S,hd] -> per-head context [B,H,S,hd]."""
    B, _, H, S, hd = qkv.shape
    tq = q_block or _pick_seq_tile(S)
    tk = kv_block or _pick_seq_tile(S)
    assert S % tq == 0 and S % tk == 0

    kernel = _make_flash_attn_kernel(1.0 / math.sqrt(hd), compute_dtype)
    grid = (B, H, S // tq, S // tk)
    # The same packed qkv tensor is passed three times; the 0/1/2 q/k/v index
    # and the head index are baked into the BlockSpec index_maps, so no
    # wrapper-side head-split transposes (and no HBM round trips) are needed.
    return pl.pallas_call(
        kernel,
        out_shape=jax.ShapeDtypeStruct((B, H, S, hd), qkv.dtype),
        grid_spec=pltpu.PrefetchScalarGridSpec(
            num_scalar_prefetch=0,
            grid=grid,
            in_specs=[
                pl.BlockSpec((None, None, None, tq, hd),
                             lambda b, h, qi, ki: (b, 0, h, qi, 0)),
                pl.BlockSpec((None, None, None, tk, hd),
                             lambda b, h, qi, ki: (b, 1, h, ki, 0)),
                pl.BlockSpec((None, None, None, tk, hd),
                             lambda b, h, qi, ki: (b, 2, h, ki, 0)),
            ],
            out_specs=pl.BlockSpec((None, None, tq, hd),
                                   lambda b, h, qi, ki: (b, h, qi, 0)),
            scratch_shapes=[
                pltpu.VMEM((tq, 1), jnp.float32),   # running max
                pltpu.VMEM((tq, 1), jnp.float32),   # running sum
                pltpu.VMEM((tq, hd), jnp.float32),  # f32 output accumulator
            ],
        ),
        compiler_params=pltpu.CompilerParams(
            dimension_semantics=("parallel", "parallel", "parallel", "arbitrary"),
            vmem_limit_bytes=_VMEM_LIMIT_BYTES),
    )(qkv, qkv, qkv)


# ---------------------------------------------------------------------------
# Kernel 3: output projection, per-head K-reduction (consumes [B,H,S,hd])
# ---------------------------------------------------------------------------
def _make_out_proj_kernel(compute_dtype):
    def kernel(x_ref, w_ref, b_ref, o_ref, acc_ref):
        h = pl.program_id(3)

        @pl.when(h == 0)
        def _():
            acc_ref[...] = jnp.zeros(acc_ref.shape, acc_ref.dtype)

        acc_ref[...] += jnp.dot(x_ref[...].astype(compute_dtype),
                                w_ref[...].astype(compute_dtype),
                                preferred_element_type=jnp.float32)

        @pl.when(h == pl.num_programs(3) - 1)
        def _():
            o_ref[...] = (acc_ref[...] + b_ref[...].astype(jnp.float32)
                          ).astype(o_ref.dtype)
    return kernel


def out_projection(ctx, wo, bo, *, compute_dtype, seq_block=None, n_block=None):
    """ctx: [B,H,S,hd], wo: [H,hd,D], bo: [1,D] -> [B,S,D]."""
    B, H, S, hd = ctx.shape
    D = wo.shape[-1]
    ts = seq_block or _pick_seq_tile(S)
    tn = n_block or _pick_lane_tile(D)
    assert S % ts == 0 and D % tn == 0

    grid = (B, S // ts, D // tn, H)   # head axis = K reduction, innermost
    return pl.pallas_call(
        _make_out_proj_kernel(compute_dtype),
        out_shape=jax.ShapeDtypeStruct((B, S, D), ctx.dtype),
        grid_spec=pltpu.PrefetchScalarGridSpec(
            num_scalar_prefetch=0,
            grid=grid,
            in_specs=[
                pl.BlockSpec((None, None, ts, hd),
                             lambda b, si, j, h: (b, h, si, 0)),
                pl.BlockSpec((None, hd, tn), lambda b, si, j, h: (h, 0, j)),
                pl.BlockSpec((1, tn), lambda b, si, j, h: (0, j)),
            ],
            out_specs=pl.BlockSpec((None, ts, tn),
                                   lambda b, si, j, h: (b, si, j)),
            scratch_shapes=[pltpu.VMEM((ts, tn), jnp.float32)],
        ),
        compiler_params=pltpu.CompilerParams(
            dimension_semantics=("parallel", "parallel", "parallel", "arbitrary"),
            vmem_limit_bytes=_VMEM_LIMIT_BYTES),
    )(ctx, wo, bo)


# ---------------------------------------------------------------------------
# Full MHA forward (mask=None path of the PyTorch module)
# ---------------------------------------------------------------------------
def multi_head_attention(x, packed, num_heads, *, compute_dtype=None,
                         seq_block=None, q_block=None, kv_block=None):
    """x: [B,S,D]; packed = pack_params(...) weights.  Returns [B,S,D]."""
    del num_heads  # head count is encoded in the packed weight shapes
    compute_dtype = compute_dtype or x.dtype
    qkv = qkv_projection(x, packed["wqkv"], packed["bqkv"],
                         compute_dtype=compute_dtype, seq_block=seq_block)
    ctx = flash_attention(qkv, compute_dtype=compute_dtype,
                          q_block=q_block, kv_block=kv_block)
    return out_projection(ctx, packed["wo"], packed["bo"],
                          compute_dtype=compute_dtype, seq_block=seq_block)


# ---------------------------------------------------------------------------
# One-time parameter packing (outside the jitted forward)
# ---------------------------------------------------------------------------
def pack_params(params, num_heads):
    """Pack [D_in, D_out] weights into the layouts the kernels consume."""
    D = params["wq"].shape[0]
    hd = D // num_heads
    wqkv = jnp.stack([params["wq"], params["wk"], params["wv"]])      # [3,D,D]
    wqkv = wqkv.reshape(3, D, num_heads, hd).transpose(0, 2, 1, 3)    # [3,H,D,hd]
    bqkv = jnp.stack([params["bq"], params["bk"], params["bv"]])      # [3,1,D]
    bqkv = bqkv.reshape(3, num_heads, 1, hd)                          # [3,H,1,hd]
    wo = params["wo"].reshape(num_heads, hd, D)                       # [H,hd,D]
    return {"wqkv": wqkv, "bqkv": bqkv, "wo": wo, "bo": params["bo"]}


# ---------------------------------------------------------------------------
# Plain-JAX reference mirroring the PyTorch forward (mask=None)
# ---------------------------------------------------------------------------
def reference_mha(x, params, num_heads):
    B, S, D = x.shape
    hd = D // num_heads

    def lin(t, w, b):
        return t @ w + b  # weights stored (D_in, D_out)

    Q = lin(x, params["wq"], params["bq"]).reshape(B, S, num_heads, hd).transpose(0, 2, 1, 3)
    K = lin(x, params["wk"], params["bk"]).reshape(B, S, num_heads, hd).transpose(0, 2, 1, 3)
    V = lin(x, params["wv"], params["bv"]).reshape(B, S, num_heads, hd).transpose(0, 2, 1, 3)
    scores = jnp.einsum("bhqd,bhkd->bhqk", Q, K) / math.sqrt(hd)
    attn = jax.nn.softmax(scores, axis=-1)
    ctx = jnp.einsum("bhqk,bhkd->bhqd", attn, V)
    ctx = ctx.transpose(0, 2, 1, 3).reshape(B, S, D)
    return lin(ctx, params["wo"], params["bo"])


def init_params(key, d_model):
    """Deterministic nn.Linear-style init; weights stored as [D_in, D_out]."""
    ks = jax.random.split(key, 8)
    bound = 1.0 / math.sqrt(d_model)

    def w(k):
        return jax.random.uniform(k, (d_model, d_model), jnp.float32, -bound, bound)

    def b(k):
        return jax.random.uniform(k, (1, d_model), jnp.float32, -bound, bound)

    return {
        "wq": w(ks[0]), "bq": b(ks[1]),
        "wk": w(ks[2]), "bk": b(ks[3]),
        "wv": w(ks[4]), "bv": b(ks[5]),
        "wo": w(ks[6]), "bo": b(ks[7]),
    }


if __name__ == "__main__":
    B, S, D = 2, 8, 32
    NUM_HEADS = 4

    key = jax.random.PRNGKey(0)
    key_x, key_p = jax.random.split(key)
    x = jax.random.normal(key_x, (B, S, D), dtype=jnp.float32)
    params = init_params(key_p, D)
    packed = pack_params(params, NUM_HEADS)        # once, outside jit

    ref = reference_mha(x, params, NUM_HEADS)

    # f32 operands, f32 accumulation (tolerance covers EUP approx reciprocal).
    mha = jax.jit(functools.partial(multi_head_attention, num_heads=NUM_HEADS))
    out = jax.block_until_ready(mha(x, packed))
    assert out.shape == (B, S, D)
    assert jnp.allclose(out, ref, atol=3e-3, rtol=3e-3), "f32 mismatch vs reference"

    # f32 inputs, bf16 matmul operands, f32 accumulation (v6e/v7x MXU recipe).
    mha_bf16c = jax.jit(functools.partial(multi_head_attention,
                                          num_heads=NUM_HEADS,
                                          compute_dtype=jnp.bfloat16))
    out_c = jax.block_until_ready(mha_bf16c(x, packed))
    assert jnp.allclose(out_c, ref, atol=5e-2, rtol=5e-2), "bf16-compute mismatch"

    # Fully bf16 activations/weights path.
    x_bf = x.astype(jnp.bfloat16)
    packed_bf = jax.tree_util.tree_map(lambda p: p.astype(jnp.bfloat16), packed)
    out_bf = jax.block_until_ready(mha(x_bf, packed_bf)).astype(jnp.float32)
    assert jnp.allclose(out_bf, ref, atol=5e-2, rtol=5e-2), "bf16 mismatch vs reference"

    print("KERNEL_OK")
</pallas_src>

<mosaic_0001>
module attributes {stable_mosaic.version = 11 : i64} {
  func.func @kernel(%arg0: i32, %arg1: i32, %arg2: i32, %arg3: i32, %arg4: memref<1x1x1x8x8xf32, #tpu.memory_space<vmem>>, %arg5: memref<1x1x1x8x8xf32, #tpu.memory_space<vmem>>, %arg6: memref<1x1x1x8x8xf32, #tpu.memory_space<vmem>>, %arg7: memref<1x1x8x8xf32, #tpu.memory_space<vmem>>, %arg8: memref<8x1xf32, #tpu.memory_space<vmem>>, %arg9: memref<8x1xf32, #tpu.memory_space<vmem>>, %arg10: memref<8x8xf32, #tpu.memory_space<vmem>>) attributes {dimension_semantics = [#tpu.dimension_semantics<parallel>, #tpu.dimension_semantics<parallel>, #tpu.dimension_semantics<parallel>, #tpu.dimension_semantics<arbitrary>], iteration_bounds = array<i64: 2, 4, 1, 1>, scalar_prefetch = 0 : i64, scratch_operands = 3 : i64, tpu.core_type = #tpu.core_type<tc>, window_params = [{transform_indices = @transform_0, window_bounds = array<i64: 1, 1, 1, 8, 8>}, {transform_indices = @transform_1, window_bounds = array<i64: 1, 1, 1, 8, 8>}, {transform_indices = @transform_2, window_bounds = array<i64: 1, 1, 1, 8, 8>}, {transform_indices = @transform_3, window_bounds = array<i64: 1, 1, 8, 8>}]} {
    %c0_i32 = arith.constant 0 : i32
    %0 = arith.cmpi eq, %arg3, %c0_i32 : i32
    %1 = arith.extui %0 : i1 to i32
    %c0_i32_0 = arith.constant 0 : i32
    %2 = arith.cmpi ne, %1, %c0_i32_0 : i32
    scf.if %2 {
      %cst_33 = arith.constant 0xFF800000 : f32
      %37 = vector.broadcast %cst_33 : f32 to vector<8x1xf32>
      %c0_34 = arith.constant 0 : index
      %c0_35 = arith.constant 0 : index
      %38 = vector.load %arg8[%c0_34, %c0_35] : memref<8x1xf32, #tpu.memory_space<vmem>>, vector<8x1xf32>
      tpu.vector_store %arg8[%c0_34, %c0_35], %37 {strides = array<i32>} : memref<8x1xf32, #tpu.memory_space<vmem>>, vector<8x1xf32>,
      %cst_36 = arith.constant 0.000000e+00 : f32
      %39 = vector.broadcast %cst_36 : f32 to vector<8x1xf32>
      %c0_37 = arith.constant 0 : index
      %c0_38 = arith.constant 0 : index
      %40 = vector.load %arg9[%c0_37, %c0_38] : memref<8x1xf32, #tpu.memory_space<vmem>>, vector<8x1xf32>
      tpu.vector_store %arg9[%c0_37, %c0_38], %39 {strides = array<i32>} : memref<8x1xf32, #tpu.memory_space<vmem>>, vector<8x1xf32>,
      %cst_39 = arith.constant 0.000000e+00 : f32
      %41 = vector.broadcast %cst_39 : f32 to vector<8x8xf32>
      %c0_40 = arith.constant 0 : index
      %c0_41 = arith.constant 0 : index
      %42 = vector.load %arg10[%c0_40, %c0_41] : memref<8x8xf32, #tpu.memory_space<vmem>>, vector<8x8xf32>
      tpu.vector_store %arg10[%c0_40, %c0_41], %41 {strides = array<i32>} : memref<8x8xf32, #tpu.memory_space<vmem>>, vector<8x8xf32>,
    } else {
    }
    %c0 = arith.constant 0 : index
    %c0_1 = arith.constant 0 : index
    %c0_2 = arith.constant 0 : index
    %c0_3 = arith.constant 0 : index
    %c0_4 = arith.constant 0 : index
    %3 = vector.load %arg4[%c0, %c0_1, %c0_2, %c0_3, %c0_4] : memref<1x1x1x8x8xf32, #tpu.memory_space<vmem>>, vector<1x1x1x8x8xf32>
    %4 = vector.shape_cast %3 : vector<1x1x1x8x8xf32> to vector<8x8xf32>
    %cst = arith.constant 0.353553385 : f32
    %5 = vector.broadcast %cst : f32 to vector<8x8xf32>
    %6 = arith.mulf %4, %5 : vector<8x8xf32>
    %c0_5 = arith.constant 0 : index
    %c0_6 = arith.constant 0 : index
    %c0_7 = arith.constant 0 : index
    %c0_8 = arith.constant 0 : index
    %c0_9 = arith.constant 0 : index
    %7 = vector.load %arg5[%c0_5, %c0_6, %c0_7, %c0_8, %c0_9] : memref<1x1x1x8x8xf32, #tpu.memory_space<vmem>>, vector<1x1x1x8x8xf32>
    %8 = vector.shape_cast %7 : vector<1x1x1x8x8xf32> to vector<8x8xf32>
    %cst_10 = arith.constant dense<0.000000e+00> : vector<8x8xf32>
    %9 = tpu.matmul %6, %8, %cst_10 {dimension_numbers = #tpu.dot_dimension_numbers<[1], [1], [0], [0], [0, 0, 1, 0], [], []>} : vector<8x8xf32>, vector<8x8xf32>, vector<8x8xf32> -> vector<8x8xf32>
    %c0_11 = arith.constant 0 : index
    %c0_12 = arith.constant 0 : index
    %10 = vector.load %arg8[%c0_11, %c0_12] : memref<8x1xf32, #tpu.memory_space<vmem>>, vector<8x1xf32>
    %cst_13 = arith.constant dense<0xFF800000> : vector<8xf32>
    %11 = vector.multi_reduction <maximumf>, %9, %cst_13 [1] : vector<8x8xf32> to vector<8xf32>
    %12 = vector.shape_cast %11 : vector<8xf32> to vector<8x1xf32>
    %13 = arith.maximumf %10, %12 : vector<8x1xf32>
    %14 = arith.subf %10, %13 : vector<8x1xf32>
    %15 = math.exp %14 : vector<8x1xf32>
    %16 = vector.broadcast %13 : vector<8x1xf32> to vector<8x8xf32>
    %17 = arith.subf %9, %16 : vector<8x8xf32>
    %18 = math.exp %17 : vector<8x8xf32>
    %c0_14 = arith.constant 0 : index
    %c0_15 = arith.constant 0 : index
    %19 = vector.load %arg9[%c0_14, %c0_15] : memref<8x1xf32, #tpu.memory_space<vmem>>, vector<8x1xf32>
    %20 = arith.mulf %15, %19 : vector<8x1xf32>
    %cst_16 = arith.constant dense<0.000000e+00> : vector<8xf32>
    %21 = vector.multi_reduction <add>, %18, %cst_16 [1] : vector<8x8xf32> to vector<8xf32>
    %22 = vector.shape_cast %21 : vector<8xf32> to vector<8x1xf32>
    %23 = arith.addf %20, %22 : vector<8x1xf32>
    %c0_17 = arith.constant 0 : index
    %c0_18 = arith.constant 0 : index
    %24 = vector.load %arg9[%c0_17, %c0_18] : memref<8x1xf32, #tpu.memory_space<vmem>>, vector<8x1xf32>
    tpu.vector_store %arg9[%c0_17, %c0_18], %23 {strides = array<i32>} : memref<8x1xf32, #tpu.memory_space<vmem>>, vector<8x1xf32>,
    %c0_19 = arith.constant 0 : index
    %c0_20 = arith.constant 0 : index
    %25 = vector.load %arg10[%c0_19, %c0_20] : memref<8x8xf32, #tpu.memory_space<vmem>>, vector<8x8xf32>
    %26 = vector.broadcast %15 : vector<8x1xf32> to vector<8x8xf32>
    %27 = arith.mulf %26, %25 : vector<8x8xf32>
    %c0_21 = arith.constant 0 : index
    %c0_22 = arith.constant 0 : index
    %c0_23 = arith.constant 0 : index
    %c0_24 = arith.constant 0 : index
    %c0_25 = arith.constant 0 : index
    %28 = vector.load %arg6[%c0_21, %c0_22, %c0_23, %c0_24, %c0_25] : memref<1x1x1x8x8xf32, #tpu.memory_space<vmem>>, vector<1x1x1x8x8xf32>
    %29 = vector.shape_cast %28 : vector<1x1x1x8x8xf32> to vector<8x8xf32>
    %cst_26 = arith.constant dense<0.000000e+00> : vector<8x8xf32>
    %30 = tpu.matmul %18, %29, %cst_26 {dimension_numbers = #tpu.dot_dimension_numbers<[1], [0], [0], [1], [0, 0, 1, 1], [], []>} : vector<8x8xf32>, vector<8x8xf32>, vector<8x8xf32> -> vector<8x8xf32>
    %31 = arith.addf %27, %30 : vector<8x8xf32>
    %c0_27 = arith.constant 0 : index
    %c0_28 = arith.constant 0 : index
    %32 = vector.load %arg10[%c0_27, %c0_28] : memref<8x8xf32, #tpu.memory_space<vmem>>, vector<8x8xf32>
    tpu.vector_store %arg10[%c0_27, %c0_28], %31 {strides = array<i32>} : memref<8x8xf32, #tpu.memory_space<vmem>>, vector<8x8xf32>,
    %c0_29 = arith.constant 0 : index
    %c0_30 = arith.constant 0 : index
    %33 = vector.load %arg8[%c0_29, %c0_30] : memref<8x1xf32, #tpu.memory_space<vmem>>, vector<8x1xf32>
    tpu.vector_store %arg8[%c0_29, %c0_30], %13 {strides = array<i32>} : memref<8x1xf32, #tpu.memory_space<vmem>>, vector<8x1xf32>,
    %c0_i32_31 = arith.constant 0 : i32
    %34 = arith.cmpi eq, %arg3, %c0_i32_31 : i32
    %35 = arith.extui %34 : i1 to i32
    %c0_i32_32 = arith.constant 0 : i32
    %36 = arith.cmpi ne, %35, %c0_i32_32 : i32
    scf.if %36 {
      %c0_33 = arith.constant 0 : index
      %c0_34 = arith.constant 0 : index
      %37 = vector.load %arg10[%c0_33, %c0_34] : memref<8x8xf32, #tpu.memory_space<vmem>>, vector<8x8xf32>
      %c0_35 = arith.constant 0 : index
      %c0_36 = arith.constant 0 : index
      %38 = vector.load %arg9[%c0_35, %c0_36] : memref<8x1xf32, #tpu.memory_space<vmem>>, vector<8x1xf32>
      %39 = tpu.reciprocal %38 {approx = true} : vector<8x1xf32> -> vector<8x1xf32>
      %40 = vector.broadcast %39 : vector<8x1xf32> to vector<8x8xf32>
      %41 = arith.mulf %37, %40 : vector<8x8xf32>
      %c0_37 = arith.constant 0 : index
      %c0_38 = arith.constant 0 : index
      %c0_39 = arith.constant 0 : index
      %c0_40 = arith.constant 0 : index
      %42 = vector.load %arg7[%c0_37, %c0_38, %c0_39, %c0_40] : memref<1x1x8x8xf32, #tpu.memory_space<vmem>>, vector<1x1x8x8xf32>
      %43 = vector.shape_cast %42 : vector<1x1x8x8xf32> to vector<8x8xf32>
      %44 = vector.shape_cast %41 : vector<8x8xf32> to vector<1x1x8x8xf32>
      tpu.vector_store %arg7[%c0_37, %c0_38, %c0_39, %c0_40], %44 {strides = array<i32>} : memref<1x1x8x8xf32, #tpu.memory_space<vmem>>, vector<1x1x8x8xf32>,
    } else {
    }
    return
  }
  func.func @transform_0(%arg0: i32, %arg1: i32, %arg2: i32, %arg3: i32) -> (i32, i32, i32, i32, i32) {
    %c0_i32 = arith.constant 0 : i32
    %c0_i32_0 = arith.constant 0 : i32
    %c0_i32_1 = arith.constant 0 : i32
    return %arg0, %c0_i32, %arg1, %arg2, %c0_i32_0 : i32, i32, i32, i32, i32
  }
  func.func @transform_1(%arg0: i32, %arg1: i32, %arg2: i32, %arg3: i32) -> (i32, i32, i32, i32, i32) {
    %c1_i32 = arith.constant 1 : i32
    %c0_i32 = arith.constant 0 : i32
    %c0_i32_0 = arith.constant 0 : i32
    return %arg0, %c1_i32, %arg1, %arg3, %c0_i32 : i32, i32, i32, i32, i32
  }
  func.func @transform_2(%arg0: i32, %arg1: i32, %arg2: i32, %arg3: i32) -> (i32, i32, i32, i32, i32) {
    %c2_i32 = arith.constant 2 : i32
    %c0_i32 = arith.constant 0 : i32
    %c0_i32_0 = arith.constant 0 : i32
    return %arg0, %c2_i32, %arg1, %arg3, %c0_i32 : i32, i32, i32, i32, i32
  }
  func.func @transform_3(%arg0: i32, %arg1: i32, %arg2: i32, %arg3: i32) -> (i32, i32, i32, i32) {
    %c0_i32 = arith.constant 0 : i32
    %c0_i32_0 = arith.constant 0 : i32
    return %arg0, %arg1, %arg2, %c0_i32 : i32, i32, i32, i32
  }
}

module attributes {stable_mosaic.version = 11 : i64} {
  func.func @kernel(%arg0: i32, %arg1: i32, %arg2: i32, %arg3: i32, %arg4: memref<1x1x8x8xf32, #tpu.memory_space<vmem>>, %arg5: memref<1x8x32xf32, #tpu.memory_space<vmem>>, %arg6: memref<1x32xf32, #tpu.memory_space<vmem>>, %arg7: memref<1x8x32xf32, #tpu.memory_space<vmem>>, %arg8: memref<8x32xf32, #tpu.memory_space<vmem>>) attributes {dimension_semantics = [#tpu.dimension_semantics<parallel>, #tpu.dimension_semantics<parallel>, #tpu.dimension_semantics<parallel>, #tpu.dimension_semantics<arbitrary>], iteration_bounds = array<i64: 2, 1, 1, 4>, scalar_prefetch = 0 : i64, scratch_operands = 1 : i64, tpu.core_type = #tpu.core_type<tc>, window_params = [{transform_indices = @transform_0, window_bounds = array<i64: 1, 1, 8, 8>}, {transform_indices = @transform_1, window_bounds = array<i64: 1, 8, 32>}, {transform_indices = @transform_2, window_bounds = array<i64: 1, 32>}, {transform_indices = @transform_3, window_bounds = array<i64: 1, 8, 32>}]} {
    %c0_i32 = arith.constant 0 : i32
    %0 = arith.cmpi eq, %arg3, %c0_i32 : i32
    %1 = arith.extui %0 : i1 to i32
    %c0_i32_0 = arith.constant 0 : i32
    %2 = arith.cmpi ne, %1, %c0_i32_0 : i32
    scf.if %2 {
      %cst_12 = arith.constant 0.000000e+00 : f32
      %14 = vector.broadcast %cst_12 : f32 to vector<8x32xf32>
      %c0_13 = arith.constant 0 : index
      %c0_14 = arith.constant 0 : index
      %15 = vector.load %arg8[%c0_13, %c0_14] : memref<8x32xf32, #tpu.memory_space<vmem>>, vector<8x32xf32>
      tpu.vector_store %arg8[%c0_13, %c0_14], %14 {strides = array<i32>} : memref<8x32xf32, #tpu.memory_space<vmem>>, vector<8x32xf32>,
    } else {
    }
    %c0 = arith.constant 0 : index
    %c0_1 = arith.constant 0 : index
    %3 = vector.load %arg8[%c0, %c0_1] : memref<8x32xf32, #tpu.memory_space<vmem>>, vector<8x32xf32>
    %c0_2 = arith.constant 0 : index
    %c0_3 = arith.constant 0 : index
    %c0_4 = arith.constant 0 : index
    %c0_5 = arith.constant 0 : index
    %4 = vector.load %arg4[%c0_2, %c0_3, %c0_4, %c0_5] : memref<1x1x8x8xf32, #tpu.memory_space<vmem>>, vector<1x1x8x8xf32>
    %5 = vector.shape_cast %4 : vector<1x1x8x8xf32> to vector<8x8xf32>
    %c0_6 = arith.constant 0 : index
    %c0_7 = arith.constant 0 : index
    %c0_8 = arith.constant 0 : index
    %6 = vector.load %arg5[%c0_6, %c0_7, %c0_8] : memref<1x8x32xf32, #tpu.memory_space<vmem>>, vector<1x8x32xf32>
    %7 = vector.shape_cast %6 : vector<1x8x32xf32> to vector<8x32xf32>
    %cst = arith.constant dense<0.000000e+00> : vector<8x32xf32>
    %8 = tpu.matmul %5, %7, %cst {dimension_numbers = #tpu.dot_dimension_numbers<[1], [0], [0], [1], [0, 0, 1, 1], [], []>} : vector<8x8xf32>, vector<8x32xf32>, vector<8x32xf32> -> vector<8x32xf32>
    %9 = arith.addf %3, %8 : vector<8x32xf32>
    %c0_9 = arith.constant 0 : index
    %c0_10 = arith.constant 0 : index
    %10 = vector.load %arg8[%c0_9, %c0_10] : memref<8x32xf32, #tpu.memory_space<vmem>>, vector<8x32xf32>
    tpu.vector_store %arg8[%c0_9, %c0_10], %9 {strides = array<i32>} : memref<8x32xf32, #tpu.memory_space<vmem>>, vector<8x32xf32>,
    %c3_i32 = arith.constant 3 : i32
    %11 = arith.cmpi eq, %arg3, %c3_i32 : i32
    %12 = arith.extui %11 : i1 to i32
    %c0_i32_11 = arith.constant 0 : i32
    %13 = arith.cmpi ne, %12, %c0_i32_11 : i32
    scf.if %13 {
      %c0_12 = arith.constant 0 : index
      %c0_13 = arith.constant 0 : index
      %14 = vector.load %arg8[%c0_12, %c0_13] : memref<8x32xf32, #tpu.memory_space<vmem>>, vector<8x32xf32>
      %c0_14 = arith.constant 0 : index
      %c0_15 = arith.constant 0 : index
      %15 = vector.load %arg6[%c0_14, %c0_15] : memref<1x32xf32, #tpu.memory_space<vmem>>, vector<1x32xf32>
      %16 = vector.broadcast %15 : vector<1x32xf32> to vector<8x32xf32>
      %17 = arith.addf %14, %16 : vector<8x32xf32>
      %c0_16 = arith.constant 0 : index
      %c0_17 = arith.constant 0 : index
      %c0_18 = arith.constant 0 : index
      %18 = vector.load %arg7[%c0_16, %c0_17, %c0_18] : memref<1x8x32xf32, #tpu.memory_space<vmem>>, vector<1x8x32xf32>
      %19 = vector.shape_cast %18 : vector<1x8x32xf32> to vector<8x32xf32>
      %20 = vector.shape_cast %17 : vector<8x32xf32> to vector<1x8x32xf32>
      tpu.vector_store %arg7[%c0_16, %c0_17, %c0_18], %20 {strides = array<i32>} : memref<1x8x32xf32, #tpu.memory_space<vmem>>, vector<1x8x32xf32>,
    } else {
    }
    return
  }
  func.func @transform_0(%arg0: i32, %arg1: i32, %arg2: i32, %arg3: i32) -> (i32, i32, i32, i32) {
    %c0_i32 = arith.constant 0 : i32
    %c0_i32_0 = arith.constant 0 : i32
    return %arg0, %arg3, %arg1, %c0_i32 : i32, i32, i32, i32
  }
  func.func @transform_1(%arg0: i32, %arg1: i32, %arg2: i32, %arg3: i32) -> (i32, i32, i32) {
    %c0_i32 = arith.constant 0 : i32
    %c0_i32_0 = arith.constant 0 : i32
    return %arg3, %c0_i32, %arg2 : i32, i32, i32
  }
  func.func @transform_2(%arg0: i32, %arg1: i32, %arg2: i32, %arg3: i32) -> (i32, i32) {
    %c0_i32 = arith.constant 0 : i32
    %c0_i32_0 = arith.constant 0 : i32
    return %c0_i32, %arg2 : i32, i32
  }
  func.func @transform_3(%arg0: i32, %arg1: i32, %arg2: i32, %arg3: i32) -> (i32, i32, i32) {
    %c0_i32 = arith.constant 0 : i32
    return %arg0, %arg1, %arg2 : i32, i32, i32
  }
}

module attributes {stable_mosaic.version = 11 : i64} {
  func.func @kernel(%arg0: i32, %arg1: i32, %arg2: i32, %arg3: i32, %arg4: memref<1x8x32xf32, #tpu.memory_space<vmem>>, %arg5: memref<1x1x32x8xf32, #tpu.memory_space<vmem>>, %arg6: memref<1x1x1x8xf32, #tpu.memory_space<vmem>>, %arg7: memref<1x1x1x8x8xf32, #tpu.memory_space<vmem>>) attributes {dimension_semantics = [#tpu.dimension_semantics<parallel>, #tpu.dimension_semantics<parallel>, #tpu.dimension_semantics<parallel>, #tpu.dimension_semantics<parallel>], iteration_bounds = array<i64: 3, 4, 2, 1>, scalar_prefetch = 0 : i64, scratch_operands = 0 : i64, tpu.core_type = #tpu.core_type<tc>, window_params = [{transform_indices = @transform_0, window_bounds = array<i64: 1, 8, 32>}, {transform_indices = @transform_1, window_bounds = array<i64: 1, 1, 32, 8>}, {transform_indices = @transform_2, window_bounds = array<i64: 1, 1, 1, 8>}, {transform_indices = @transform_3, window_bounds = array<i64: 1, 1, 1, 8, 8>}]} {
    %c0 = arith.constant 0 : index
    %c0_0 = arith.constant 0 : index
    %c0_1 = arith.constant 0 : index
    %0 = vector.load %arg4[%c0, %c0_0, %c0_1] : memref<1x8x32xf32, #tpu.memory_space<vmem>>, vector<1x8x32xf32>
    %1 = vector.shape_cast %0 : vector<1x8x32xf32> to vector<8x32xf32>
    %c0_2 = arith.constant 0 : index
    %c0_3 = arith.constant 0 : index
    %c0_4 = arith.constant 0 : index
    %c0_5 = arith.constant 0 : index
    %2 = vector.load %arg5[%c0_2, %c0_3, %c0_4, %c0_5] : memref<1x1x32x8xf32, #tpu.memory_space<vmem>>, vector<1x1x32x8xf32>
    %3 = vector.shape_cast %2 : vector<1x1x32x8xf32> to vector<32x8xf32>
    %cst = arith.constant dense<0.000000e+00> : vector<8x8xf32>
    %4 = tpu.matmul %1, %3, %cst {dimension_numbers = #tpu.dot_dimension_numbers<[1], [0], [0], [1], [0, 0, 1, 1], [], []>} : vector<8x32xf32>, vector<32x8xf32>, vector<8x8xf32> -> vector<8x8xf32>
    %c0_6 = arith.constant 0 : index
    %c0_7 = arith.constant 0 : index
    %c0_8 = arith.constant 0 : index
    %c0_9 = arith.constant 0 : index
    %5 = vector.load %arg6[%c0_6, %c0_7, %c0_8, %c0_9] : memref<1x1x1x8xf32, #tpu.memory_space<vmem>>, vector<1x1x1x8xf32>
    %6 = vector.shape_cast %5 : vector<1x1x1x8xf32> to vector<1x8xf32>
    %7 = vector.broadcast %6 : vector<1x8xf32> to vector<8x8xf32>
    %8 = arith.addf %4, %7 : vector<8x8xf32>
    %c0_10 = arith.constant 0 : index
    %c0_11 = arith.constant 0 : index
    %c0_12 = arith.constant 0 : index
    %c0_13 = arith.constant 0 : index
    %c0_14 = arith.constant 0 : index
    %9 = vector.load %arg7[%c0_10, %c0_11, %c0_12, %c0_13, %c0_14] : memref<1x1x1x8x8xf32, #tpu.memory_space<vmem>>, vector<1x1x1x8x8xf32>
    %10 = vector.shape_cast %9 : vector<1x1x1x8x8xf32> to vector<8x8xf32>
    %11 = vector.shape_cast %8 : vector<8x8xf32> to vector<1x1x1x8x8xf32>
    tpu.vector_store %arg7[%c0_10, %c0_11, %c0_12, %c0_13, %c0_14], %11 {strides = array<i32>} : memref<1x1x1x8x8xf32, #tpu.memory_space<vmem>>, vector<1x1x1x8x8xf32>,
    return
  }
  func.func @transform_0(%arg0: i32, %arg1: i32, %arg2: i32, %arg3: i32) -> (i32, i32, i32) {
    %c0_i32 = arith.constant 0 : i32
    %c0_i32_0 = arith.constant 0 : i32
    return %arg2, %arg3, %c0_i32 : i32, i32, i32
  }
  func.func @transform_1(%arg0: i32, %arg1: i32, %arg2: i32, %arg3: i32) -> (i32, i32, i32, i32) {
    %c0_i32 = arith.constant 0 : i32
    %c0_i32_0 = arith.constant 0 : i32
    %c0_i32_1 = arith.constant 0 : i32
    return %arg0, %arg1, %c0_i32, %c0_i32_0 : i32, i32, i32, i32
  }
  func.func @transform_2(%arg0: i32, %arg1: i32, %arg2: i32, %arg3: i32) -> (i32, i32, i32, i32) {
    %c0_i32 = arith.constant 0 : i32
    %c0_i32_0 = arith.constant 0 : i32
    %c0_i32_1 = arith.constant 0 : i32
    return %arg0, %arg1, %c0_i32, %c0_i32_0 : i32, i32, i32, i32
  }
  func.func @transform_3(%arg0: i32, %arg1: i32, %arg2: i32, %arg3: i32) -> (i32, i32, i32, i32, i32) {
    %c0_i32 = arith.constant 0 : i32
    %c0_i32_0 = arith.constant 0 : i32
    return %arg2, %arg0, %arg1, %arg3, %c0_i32 : i32, i32, i32, i32, i32
  }
}

</mosaic_0001>

<llo_original>
// kernel: multi_head_attention.3
$region0: #{multi_head_attention.3}
  #allocation0 [shape = 'u32[]', space=smem, size = 0x4, offset = 0x4, fixed_abs, tag = 'smem constant byte address 0x4 - core index']
  #allocation1 [shape = 'u32[144,128]{1,0:T(1,128)}', space=vmem, size = 0x12000, scoped, tag = 'internal scratch']
  %s0 = inlined_call_operand.vmem [shape: f32[2,8,32], index: 0, kind: input, shape index: {}]
  %s1 = inlined_call_operand.vmem [shape: f32[3,4,32,8], index: 1, kind: input, shape index: {}]
  %s2 = inlined_call_operand.vmem [shape: f32[3,4,1,8], index: 2, kind: input, shape index: {}]
  %s3 = inlined_call_operand.vmem [shape: f32[2,3,4,8,8], index: 3, kind: output, shape index: {}]
  %s4 = sld [smem:[#allocation0]]
  $region45: #{multi_head_attention.3} parent=0
    _
  %s6 = ssub.s32 1, %s4
  %s7 = scalar_select 0, %s6, %s4
  loop: start=0, step=1, limit=26
  $region2: #{multi_head_attention.3} parent=0 // loop_pre_header
    _
  $region3: #{multi_head_attention.3} parent=0 // loop_header
    %s9 = sphi 0, %s13
    %p10 = scmp.ge.s32.totalorder %s9, 26
    %s16 = sphi 0, %s42
    %s17 = sphi 0, %s38
    %s18 = sphi 0, %s34
    %s19 = sphi 0, %s30
    %s20 = sphi 0, %s16
    %s21 = sphi 0, %s17
    %s22 = sphi 0, %s18
    %s23 = sphi 0, %s19
    %s24 = sphi 0, %s20
    %s25 = sphi 0, %s21
    %s26 = sphi 0, %s22
    %s27 = sphi 0, %s23
    %s47 = sphi 0, %s49
    %s50 = sphi 0, %s47
    %s51 = sphi 0, %s50
    %s67 = sphi 0, %s51
    %s75 = sphi 0, %s77
    %s78 = sphi 0, %s75
    %s79 = sphi 0, %s78
    %s95 = sphi 0, %s79
    %s103 = sphi 0, %s105
    %s106 = sphi 0, %s103
    %s107 = sphi 0, %s106
    %s123 = sphi 0, %s107
    %s135 = sphi 0, %s137
    %s138 = sphi 0, %s135
    %s139 = sphi 0, %s138
    %s155 = sphi 0, %s139
  $region4: #{multi_head_attention.3} parent=0 // loop_header_branch
    %12 = sbr.rel (%p10) target = $region8
  $region5: #{multi_head_attention.3} parent=0 // loop_body
    %s14 = ssub.s32 %s9, 1
    %s15 = ssub.s32 %s9, 2
    %s28 = sadd.s32 1, %s19
    %p29 = scmp.ge.s32.totalorder %s28, 1
    %s30 = scalar_select %p29, 0, %s28
    %s31 = sadd.s32 1, %s18
    %s32 = scalar_select %p29, %s31, %s18
    %p33 = scmp.ge.s32.totalorder %s32, 2
    %s34 = scalar_select %p33, 0, %s32
    %s35 = sadd.s32 1, %s17
    %s36 = scalar_select %p33, %s35, %s17
    %p37 = scmp.ge.s32.totalorder %s36, 4
    %s38 = scalar_select %p37, 0, %s36
    %s39 = sadd.s32 1, %s16
    %s40 = scalar_select %p37, %s39, %s16
    %p41 = scmp.ge.s32.totalorder %s40, 3
    %s42 = scalar_select %p41, 0, %s40
    %s43 = ssub.s32 %s18, %s34
    %s44 = ssub.s32 %s19, %s30
    %s45 = sor.u32 %s43, %s44
    %p46 = scmp.eq.s32.totalorder %s45, 0
    %s48 = sadd.s32 %s47, 1
    %s49 = scalar_select %p46, %s47, %s48
    %p52 = pneg %p46
    %p53 = scmp.eq.s32.totalorder %s9, 23
    %p54 = por %p52, %p53
    %p55 = scmp.ne.s32.totalorder %s47, %s50
    %p56 = scmp.eq.s32.totalorder %s9, 0
    %p57 = por %p55, %p56
    %p58 = scmp.ne.s32.totalorder %s47, %s50
    %p59 = scmp.eq.s32.totalorder %s14, 23
    %p60 = por %p58, %p59
    %p61 = scmp.ne.s32.totalorder %s50, %s51
    %p62 = scmp.eq.s32.totalorder %s14, 0
    %p63 = por %p61, %p62
    %p64 = scmp.ne.s32.totalorder %s50, %s51
    %p65 = scmp.eq.s32.totalorder %s15, 23
    %p66 = por %p64, %p65
    %p68 = scmp.ne.s32.totalorder %s51, %s67
    %p69 = scmp.eq.s32.totalorder %s15, 0
    %p70 = por %p68, %p69
    %s71 = ssub.s32 %s16, %s42
    %s72 = ssub.s32 %s17, %s38
    %s73 = sor.u32 %s71, %s72
    %p74 = scmp.eq.s32.totalorder %s73, 0
    %s76 = sadd.s32 %s75, 1
    %s77 = scalar_select %p74, %s75, %s76
    %p80 = pneg %p74
    %p81 = scmp.eq.s32.totalorder %s9, 23
    %p82 = por %p80, %p81
    %p83 = scmp.ne.s32.totalorder %s75, %s78
    %p84 = scmp.eq.s32.totalorder %s9, 0
    %p85 = por %p83, %p84
    %p86 = scmp.ne.s32.totalorder %s75, %s78
    %p87 = scmp.eq.s32.totalorder %s14, 23
    %p88 = por %p86, %p87
    %p89 = scmp.ne.s32.totalorder %s78, %s79
    %p90 = scmp.eq.s32.totalorder %s14, 0
    %p91 = por %p89, %p90
    %p92 = scmp.ne.s32.totalorder %s78, %s79
    %p93 = scmp.eq.s32.totalorder %s15, 23
    %p94 = por %p92, %p93
    %p96 = scmp.ne.s32.totalorder %s79, %s95
    %p97 = scmp.eq.s32.totalorder %s15, 0
    %p98 = por %p96, %p97
    %s99 = ssub.s32 %s16, %s42
    %s100 = ssub.s32 %s17, %s38
    %s101 = sor.u32 %s99, %s100
    %p102 = scmp.eq.s32.totalorder %s101, 0
    %s104 = sadd.s32 %s103, 1
    %s105 = scalar_select %p102, %s103, %s104
    %p108 = pneg %p102
    %p109 = scmp.eq.s32.totalorder %s9, 23
    %p110 = por %p108, %p109
    %p111 = scmp.ne.s32.totalorder %s103, %s106
    %p112 = scmp.eq.s32.totalorder %s9, 0
    %p113 = por %p111, %p112
    %p114 = scmp.ne.s32.totalorder %s103, %s106
    %p115 = scmp.eq.s32.totalorder %s14, 23
    %p116 = por %p114, %p115
    %p117 = scmp.ne.s32.totalorder %s106, %s107
    %p118 = scmp.eq.s32.totalorder %s14, 0
    %p119 = por %p117, %p118
    %p120 = scmp.ne.s32.totalorder %s106, %s107
    %p121 = scmp.eq.s32.totalorder %s15, 23
    %p122 = por %p120, %p121
    %p124 = scmp.ne.s32.totalorder %s107, %s123
    %p125 = scmp.eq.s32.totalorder %s15, 0
    %p126 = por %p124, %p125
    %s127 = ssub.s32 %s18, %s34
    %s128 = ssub.s32 %s16, %s42
    %s129 = sor.u32 %s127, %s128
    %s130 = ssub.s32 %s17, %s38
    %s131 = sor.u32 %s129, %s130
    %s132 = ssub.s32 %s19, %s30
    %s133 = sor.u32 %s131, %s132
    %p134 = scmp.eq.s32.totalorder %s133, 0
    %s136 = sadd.s32 %s135, 1
    %s137 = scalar_select %p134, %s135, %s136
    %p140 = pneg %p134
    %p141 = scmp.eq.s32.totalorder %s9, 23
    %p142 = por %p140, %p141
    %p143 = scmp.ne.s32.totalorder %s135, %s138
    %p144 = scmp.eq.s32.totalorder %s9, 0
    %p145 = por %p143, %p144
    %p146 = scmp.ne.s32.totalorder %s135, %s138
    %p147 = scmp.eq.s32.totalorder %s14, 23
    %p148 = por %p146, %p147
    %p149 = scmp.ne.s32.totalorder %s138, %s139
    %p150 = scmp.eq.s32.totalorder %s14, 0
    %p151 = por %p149, %p150
    %p152 = scmp.ne.s32.totalorder %s138, %s139
    %p153 = scmp.eq.s32.totalorder %s15, 23
    %p154 = por %p152, %p153
    %p156 = scmp.ne.s32.totalorder %s139, %s155
    %p157 = scmp.eq.s32.totalorder %s15, 0
    %p158 = por %p156, %p157
    %p159 = scmp.le.s32.totalorder 1, %s9
    %p160 = scmp.lt.s32.totalorder %s9, 25
    %p161 = pnand %p159, %p160
    %p162 = pneg %p161
    // Predicated region
    $region9: #{multi_head_attention.3} parent=5 // pred_check
      _
    $region10: #{multi_head_attention.3} parent=5 // pred_check_branch
      %164 = sbr.rel (%p161) target = $region12
    $region11: #{multi_head_attention.3} parent=5 // pred_region
      %s165 = ssub.s32 %s9, 1
    $region12: #{multi_head_attention.3} parent=5 // pred_fallthru
      _
    %p166 = scmp.lt.s32.totalorder %s9, 24
    // Predicated region
    $region13: #{multi_head_attention.3} parent=5 // pred_check
      %p167 = pneg %p166
    $region14: #{multi_head_attention.3} parent=5 // pred_check_branch
      %169 = sbr.rel (%p167) target = $region16
    $region15: #{multi_head_attention.3} parent=5 // pred_region
      // Predicated region
      $region17: #{multi_head_attention.3} parent=15 // pred_check
        %p170 = pneg %p57
      $region18: #{multi_head_attention.3} parent=15 // pred_check_branch
        %172 = sbr.rel (%p170) target = $region20
      $region19: #{multi_head_attention.3} parent=15 // pred_region
        %p173 = scmp.lt.s32.totalorder %s18, 1
        %s174 = scalar_select %p173, %s18, 1
        %p175 = scmp.lt.s32.totalorder %s19, 0
        %s176 = scalar_select %p175, %s19, 0
        %s177 = sadd.s32 %s176, %s174
        %s178 = smul.addr %s177, 8
        %s179 = scalar_lea.vmem %s0, %s178
      $region20: #{multi_head_attention.3} parent=15 // pred_fallthru
        _
      // Predicated region
      $region21: #{multi_head_attention.3} parent=15 // pred_check
        %p180 = pneg %p85
      $region22: #{multi_head_attention.3} parent=15 // pred_check_branch
        %182 = sbr.rel (%p180) target = $region24
      $region23: #{multi_head_attention.3} parent=15 // pred_region
        %p183 = scmp.lt.s32.totalorder %s16, 2
        %s184 = scalar_select %p183, %s16, 2
        %p185 = scmp.lt.s32.totalorder %s17, 3
        %s186 = scalar_select %p185, %s17, 3
        %s187 = smul.addr %s186, 4
        %s188 = smul.addr %s184, 16
        %s189 = sadd.s32 %s187, %s188
        %s190 = smul.addr %s189, 8
        %s191 = scalar_lea.vmem %s1, %s190
      $region24: #{multi_head_attention.3} parent=15 // pred_fallthru
        _
      // Predicated region
      $region25: #{multi_head_attention.3} parent=15 // pred_check
        %p192 = pneg %p113
      $region26: #{multi_head_attention.3} parent=15 // pred_check_branch
        %194 = sbr.rel (%p192) target = $region28
      $region27: #{multi_head_attention.3} parent=15 // pred_region
        %p195 = scmp.lt.s32.totalorder %s16, 2
        %s196 = scalar_select %p195, %s16, 2
        %p197 = scmp.lt.s32.totalorder %s17, 3
        %s198 = scalar_select %p197, %s17, 3
        %s199 = smul.addr %s196, 4
        %s200 = sadd.s32 %s198, %s199
        %s201 = scalar_lea.vmem %s2, %s200
      $region28: #{multi_head_attention.3} parent=15 // pred_fallthru
        _
    $region16: #{multi_head_attention.3} parent=5 // pred_fallthru
      _
    %p202 = scmp.le.s32.totalorder 1, %s9
    %p203 = scmp.lt.s32.totalorder %s9, 25
    %p204 = pnand %p202, %p203
    %p205 = pneg %p204
    // Predicated region
    $region29: #{multi_head_attention.3} parent=5 // pred_check
      _
    $region30: #{multi_head_attention.3} parent=5 // pred_check_branch
      %207 = sbr.rel (%p204) target = $region32
    $region31: #{multi_head_attention.3} parent=5 // pred_region
      %s208 = ssub.s32 %s9, 1
      %p209 = scmp.lt.s32.totalorder %s22, 1
      %s210 = scalar_select %p209, %s22, 1
      %p211 = scmp.lt.s32.totalorder %s23, 0
      %s212 = scalar_select %p211, %s23, 0
      %s213 = sadd.s32 %s212, %s210
      %s214 = smul.addr %s213, 8
      %s215 = scalar_lea.vmem %s0, %s214
      %p216 = pneg %p63
      %p217 = pneg %p60
      %p218 = scmp.lt.s32.totalorder %s20, 2
      %s219 = scalar_select %p218, %s20, 2
      %p220 = scmp.lt.s32.totalorder %s21, 3
      %s221 = scalar_select %p220, %s21, 3
      %s222 = smul.addr %s221, 4
      %s223 = smul.addr %s219, 16
      %s224 = sadd.s32 %s222, %s223
      %s225 = smul.addr %s224, 8
      %s226 = scalar_lea.vmem %s1, %s225
      %p227 = pneg %p91
      %p228 = pneg %p88
      %p229 = scmp.lt.s32.totalorder %s20, 2
      %s230 = scalar_select %p229, %s20, 2
      %p231 = scmp.lt.s32.totalorder %s21, 3
      %s232 = scalar_select %p231, %s21, 3
      %s233 = smul.addr %s230, 4
      %s234 = sadd.s32 %s232, %s233
      %s235 = scalar_lea.vmem %s2, %s234
      %p236 = pneg %p119
      %p237 = pneg %p116
      %p238 = pneg %p151
      %p239 = pneg %p148
      %p240 = scmp.lt.s32.totalorder %s22, 1
      %s241 = scalar_select %p240, %s22, 1
      %p242 = scmp.lt.s32.totalorder %s20, 2
      %s243 = scalar_select %p242, %s20, 2
      %p244 = scmp.lt.s32.totalorder %s21, 3
      %s245 = scalar_select %p244, %s21, 3
      %p246 = scmp.lt.s32.totalorder %s23, 0
      %s247 = scalar_select %p246, %s23, 0
      %s248 = sadd.s32 %s247, %s245
      %s249 = smul.addr %s243, 4
      %s250 = sadd.s32 %s248, %s249
      %s251 = smul.addr %s241, 12
      %s252 = sadd.s32 %s250, %s251
      %s253 = smul.addr %s252, 8
      %s254 = scalar_lea.vmem %s3, %s253
      %p255 = scmp.lt.s32.totalorder %s22, 1
      %s256 = scalar_select %p255, %s22, 1
      %p257 = scmp.lt.s32.totalorder %s23, 0
      %s258 = scalar_select %p257, %s23, 0
      %s259 = sadd.s32 %s258, %s256
      %s260 = smul.addr %s259, 8
      %s261 = scalar_lea.vmem %s0, %s260
      %p262 = scmp.lt.s32.totalorder %s20, 2
      %s263 = scalar_select %p262, %s20, 2
      %p264 = scmp.lt.s32.totalorder %s21, 3
      %s265 = scalar_select %p264, %s21, 3
      %s266 = smul.addr %s265, 4
      %s267 = smul.addr %s263, 16
      %s268 = sadd.s32 %s266, %s267
      %s269 = smul.addr %s268, 8
      %s270 = scalar_lea.vmem %s1, %s269
      %p271 = scmp.lt.s32.totalorder %s20, 2
      %s272 = scalar_select %p271, %s20, 2
      %p273 = scmp.lt.s32.totalorder %s21, 3
      %s274 = scalar_select %p273, %s21, 3
      %s275 = smul.addr %s272, 4
      %s276 = sadd.s32 %s274, %s275
      %s277 = scalar_lea.vmem %s2, %s276
      %p278 = scmp.lt.s32.totalorder %s22, 1
      %s279 = scalar_select %p278, %s22, 1
      %p280 = scmp.lt.s32.totalorder %s20, 2
      %s281 = scalar_select %p280, %s20, 2
      %p282 = scmp.lt.s32.totalorder %s21, 3
      %s283 = scalar_select %p282, %s21, 3
      %p284 = scmp.lt.s32.totalorder %s23, 0
      %s285 = scalar_select %p284, %s23, 0
      %s286 = sadd.s32 %s285, %s283
      %s287 = smul.addr %s281, 4
      %s288 = sadd.s32 %s286, %s287
      %s289 = smul.addr %s279, 12
      %s290 = sadd.s32 %s288, %s289
      %s291 = smul.addr %s290, 8
      %s292 = scalar_lea.vmem %s3, %s291
      %v293 = vld [vmem:[%s261] sm:$0xff]
      %v294 = vld [vmem:[%s270] sm:$0xff]
      %v295 = vld [vmem:[%s270 + $0x8] sm:$0xff]
      %v296 = vld [vmem:[%s270 + $0x10] sm:$0xff]
      %v297 = vld [vmem:[%s270 + $0x18] sm:$0xff]
      %v298 = vld [vmem:[%s277] sm:$0x1]
      %v300 = vlaneseq
      %v301 = vshrl.u32 %v300, 7
      %v302 = vsub.s32 0, %v301
      %v303 = vrot.slane %v298, %v302
      %vm305 = vcmask 261120
      %v307 = vsel %vm305, %v293, 0
      %309 = vmatprep.subr.mxu0 0.0
      %310 = vmatpush1.msra.mxu0 0.0
      %311 = vmatprep.subr.mxu0 0.0
      %312 = vmatpush1.msra.mxu0 0.0
      %313 = vmatprep.subr.mxu0 0.0
      %314 = vmatpush1.msra.mxu0 0.0
      %315 = vmatprep.subr.mxu0 0.0
      %316 = vmatpush1.msra.mxu0 0.0
      %317 = vmatprep.subr.mxu0 0.0
      %318 = vmatpush1.msra.mxu0 0.0
      %319 = vmatprep.subr.mxu0 0.0
      %320 = vmatpush1.msra.mxu0 0.0
      %321 = vmatprep.subr.mxu0 0.0
      %322 = vmatpush1.msra.mxu0 0.0
      %323 = vmatprep.subr.mxu0 0.0
      %324 = vmatpush1.msra.mxu0 0.0
      %325 = vmatprep.subr.mxu0 0.0
      %326 = vmatpush1.msra.mxu0 0.0
      %327 = vmatprep.subr.mxu0 0.0
      %328 = vmatpush1.msra.mxu0 0.0
      %329 = vmatprep.subr.mxu0 0.0
      %330 = vmatpush1.msra.mxu0 0.0
      %331 = vmatprep.subr.mxu0 0.0
      %332 = vmatpush1.msra.mxu0 0.0
      %333 = vmatprep.subr.mxu0 0.0
      %334 = vmatpush1.msra.mxu0 %v297
      %335 = vmatprep.subr.mxu0 0.0
      %336 = vmatpush1.msra.mxu0 %v296
      %337 = vmatprep.subr.mxu0 0.0
      %338 = vmatpush1.msra.mxu0 %v295
      %339 = vmatprep.subr.mxu0 0.0
      %340 = vmatpush1.msra.mxu0 %v294
      %341 = vmatprep.subr.mxu0 0.0
      %342 = vmatpush2.msra.mxu0 0.0
      %343 = vmatprep.subr.mxu0 0.0
      %344 = vmatpush2.msra.mxu0 0.0
      %345 = vmatprep.subr.mxu0 0.0
      %346 = vmatpush2.msra.mxu0 0.0
      %347 = vmatprep.subr.mxu0 0.0
      %348 = vmatpush2.msra.mxu0 0.0
      %349 = vmatprep.subr.mxu0 0.0
      %350 = vmatpush2.msra.mxu0 0.0
      %351 = vmatprep.subr.mxu0 0.0
      %352 = vmatpush2.msra.mxu0 0.0
      %353 = vmatprep.subr.mxu0 0.0
      %354 = vmatpush2.msra.mxu0 0.0
      %355 = vmatprep.subr.mxu0 0.0
      %356 = vmatpush2.msra.mxu0 0.0
      %357 = vmatprep.subr.mxu0 0.0
      %358 = vmatpush2.msra.mxu0 0.0
      %359 = vmatprep.subr.mxu0 0.0
      %360 = vmatpush2.msra.mxu0 0.0
      %361 = vmatprep.subr.mxu0 0.0
      %362 = vmatpush2.msra.mxu0 0.0
      %363 = vmatprep.subr.mxu0 0.0
      %364 = vmatpush2.msra.mxu0 0.0
      %365 = vmatprep.subr.mxu0 0.0
      %366 = vmatpush2.msra.mxu0 0.0
      %367 = vmatprep.subr.mxu0 0.0
      %368 = vmatpush2.msra.mxu0 0.0
      %369 = vmatprep.subr.mxu0 0.0
      %370 = vmatpush2.msra.mxu0 0.0
      %371 = vmatprep.subr.mxu0 0.0
      %372 = vmatpush2.msra.mxu0 0.0
      %373 = vmatprep.mubr.f32.mxu0 0.0
      %374 = vmatmul.mubr.f32.gmra.mxu0 %v307
      %v375 = vpop.f32.mrf.mxu0
      %v376 = vadd.f32 %v303, %v375
      %v377 = vpop.f32.mrf.mxu0
      %378 = vdwg.mxu0
      %vm379 = vcmask 64512
      %380 = vst.msk [vmem:[%s292] sm:$0xff] %vm379, %v376
      %p381 = scmp.lt.s32.totalorder %s22, 1
      %s382 = scalar_select %p381, %s22, 1
      %p383 = scmp.lt.s32.totalorder %s20, 2
      %s384 = scalar_select %p383, %s20, 2
      %p385 = scmp.lt.s32.totalorder %s21, 3
      %s386 = scalar_select %p385, %s21, 3
      %p387 = scmp.lt.s32.totalorder %s23, 0
      %s388 = scalar_select %p387, %s23, 0
      %s389 = sadd.s32 %s388, %s386
      %s390 = smul.addr %s384, 4
      %s391 = sadd.s32 %s389, %s390
      %s392 = smul.addr %s382, 12
      %s393 = sadd.s32 %s391, %s392
      %s394 = smul.addr %s393, 8
      %s395 = scalar_lea.vmem %s3, %s394
      // Predicated region
      $region33: #{multi_head_attention.3} parent=31 // pred_check
        %p396 = pneg %p148
      $region34: #{multi_head_attention.3} parent=31 // pred_check_branch
        %398 = sbr.rel (%p396) target = $region36
      $region35: #{multi_head_attention.3} parent=31 // pred_region
        _
      $region36: #{multi_head_attention.3} parent=31 // pred_fallthru
        _
    $region32: #{multi_head_attention.3} parent=5 // pred_fallthru
      _
    %p399 = scmp.le.s32.totalorder 2, %s9
    // Predicated region
    $region37: #{multi_head_attention.3} parent=5 // pred_check
      %p400 = pneg %p399
    $region38: #{multi_head_attention.3} parent=5 // pred_check_branch
      %402 = sbr.rel (%p400) target = $region40
    $region39: #{multi_head_attention.3} parent=5 // pred_region
      %s403 = ssub.s32 %s9, 2
      // Predicated region
      $region41: #{multi_head_attention.3} parent=39 // pred_check
        %p404 = pneg %p154
      $region42: #{multi_head_attention.3} parent=39 // pred_check_branch
        %406 = sbr.rel (%p404) target = $region44
      $region43: #{multi_head_attention.3} parent=39 // pred_region
        %p407 = scmp.lt.s32.totalorder %s26, 1
        %s408 = scalar_select %p407, %s26, 1
        %p409 = scmp.lt.s32.totalorder %s24, 2
        %s410 = scalar_select %p409, %s24, 2
        %p411 = scmp.lt.s32.totalorder %s25, 3
        %s412 = scalar_select %p411, %s25, 3
        %p413 = scmp.lt.s32.totalorder %s27, 0
        %s414 = scalar_select %p413, %s27, 0
        %s415 = sadd.s32 %s414, %s412
        %s416 = smul.addr %s410, 4
        %s417 = sadd.s32 %s415, %s416
        %s418 = smul.addr %s408, 12
        %s419 = sadd.s32 %s417, %s418
        %s420 = smul.addr %s419, 8
        %s421 = scalar_lea.vmem %s3, %s420
      $region44: #{multi_head_attention.3} parent=39 // pred_fallthru
        _
    $region40: #{multi_head_attention.3} parent=5 // pred_fallthru
      _
  $region6: #{multi_head_attention.3} parent=0 // loop_footer
    %s13 = sadd.s32 1, %s9
  $region7: #{multi_head_attention.3} parent=0 // loop_footer_branch
    %8 = sbr.rel target = $region3
  $region8: #{multi_head_attention.3} parent=0 // loop_exit
    _

// kernel: multi_head_attention.5
$region0: #{multi_head_attention.5}
  #allocation0 [shape = 'u32[]', space=smem, size = 0x4, offset = 0x4, fixed_abs, tag = 'smem constant byte address 0x4 - core index']
  #allocation1 [shape = 'u32[144,128]{1,0:T(1,128)}', space=vmem, size = 0x12000, scoped, tag = 'internal scratch']
  #allocation2 [shape = 'f32[8,32]{1,0:T(8,128)}', space=vmem, size = 0x1000, scoped, tag = 'scratch operand']
  %s0 = inlined_call_operand.vmem [shape: f32[2,4,8,8], index: 0, kind: input, shape index: {}]
  %s1 = inlined_call_operand.vmem [shape: f32[4,8,32], index: 1, kind: input, shape index: {}]
  %s2 = inlined_call_operand.vmem [shape: f32[1,32], index: 2, kind: input, shape index: {}]
  %s3 = inlined_call_operand.hbm [shape: f32[2,8,32], index: 3, kind: output, shape index: {}]
  %s4 = sld [smem:[#allocation0]]
  $region53: #{multi_head_attention.5} parent=0
    _
  %s6 = ssub.s32 1, %s4
  %s7 = scalar_select 0, %s6, %s4
  $region1: #{multi_head_attention.5} parent=0
    #allocation3 [shape = 'u8[8192]{0}', space=vmem, size = 0x2000, scoped, tag = 'output window, operand 0']
    #allocation4 [shape = 's32[2]{0}', space=sflag, size = 0x8, scoped, tag = 'scoped memory for multi_head_attention.5']
    %8 = vsyncpa [#allocation4], 0
    %s9 = scalar_lea.sflag [#allocation4], 1
    %10 = vsyncpa %s9, 0
    loop: start=0, step=1, limit=10
    $region2: #{multi_head_attention.5} parent=1 // loop_pre_header
      _
    $region3: #{multi_head_attention.5} parent=1 // loop_header
      %s12 = sphi 0, %s16
      %p13 = scmp.ge.s32.totalorder %s12, 10
      %s19 = sphi 0, %s45
      %s20 = sphi 0, %s41
      %s21 = sphi 0, %s37
      %s22 = sphi 0, %s33
      %s23 = sphi 0, %s19
      %s24 = sphi 0, %s20
      %s25 = sphi 0, %s21
      %s26 = sphi 0, %s22
      %s27 = sphi 0, %s23
      %s28 = sphi 0, %s24
      %s29 = sphi 0, %s25
      %s30 = sphi 0, %s26
      %s52 = sphi 0, %s54
      %s55 = sphi 0, %s52
      %s56 = sphi 0, %s55
      %s72 = sphi 0, %s56
      %s80 = sphi 0, %s82
      %s83 = sphi 0, %s80
      %s84 = sphi 0, %s83
      %s100 = sphi 0, %s84
      %s106 = sphi 0, %s108
      %s109 = sphi 0, %s106
      %s110 = sphi 0, %s109
      %s126 = sphi 0, %s110
      %s136 = sphi 0, %s138
      %s139 = sphi 0, %s136
      %s140 = sphi 0, %s139
      %s156 = sphi 0, %s140
    $region4: #{multi_head_attention.5} parent=1 // loop_header_branch
      %15 = sbr.rel (%p13) target = $region8
    $region5: #{multi_head_attention.5} parent=1 // loop_body
      %s17 = ssub.s32 %s12, 1
      %s18 = ssub.s32 %s12, 2
      %s31 = sadd.s32 1, %s22
      %p32 = scmp.ge.s32.totalorder %s31, 4
      %s33 = scalar_select %p32, 0, %s31
      %s34 = sadd.s32 1, %s21
      %s35 = scalar_select %p32, %s34, %s21
      %p36 = scmp.ge.s32.totalorder %s35, 1
      %s37 = scalar_select %p36, 0, %s35
      %s38 = sadd.s32 1, %s20
      %s39 = scalar_select %p36, %s38, %s20
      %p40 = scmp.ge.s32.totalorder %s39, 1
      %s41 = scalar_select %p40, 0, %s39
      %s42 = sadd.s32 1, %s19
      %s43 = scalar_select %p40, %s42, %s19
      %p44 = scmp.ge.s32.totalorder %s43, 2
      %s45 = scalar_select %p44, 0, %s43
      %s46 = ssub.s32 %s19, %s45
      %s47 = ssub.s32 %s22, %s33
      %s48 = sor.u32 %s46, %s47
      %s49 = ssub.s32 %s20, %s41
      %s50 = sor.u32 %s48, %s49
      %p51 = scmp.eq.s32.totalorder %s50, 0
      %s53 = sadd.s32 %s52, 1
      %s54 = scalar_select %p51, %s52, %s53
      %p57 = pneg %p51
      %p58 = scmp.eq.s32.totalorder %s12, 7
      %p59 = por %p57, %p58
      %p60 = scmp.ne.s32.totalorder %s52, %s55
      %p61 = scmp.eq.s32.totalorder %s12, 0
      %p62 = por %p60, %p61
      %p63 = scmp.ne.s32.totalorder %s52, %s55
      %p64 = scmp.eq.s32.totalorder %s17, 7
      %p65 = por %p63, %p64
      %p66 = scmp.ne.s32.totalorder %s55, %s56
      %p67 = scmp.eq.s32.totalorder %s17, 0
      %p68 = por %p66, %p67
      %p69 = scmp.ne.s32.totalorder %s55, %s56
      %p70 = scmp.eq.s32.totalorder %s18, 7
      %p71 = por %p69, %p70
      %p73 = scmp.ne.s32.totalorder %s56, %s72
      %p74 = scmp.eq.s32.totalorder %s18, 0
      %p75 = por %p73, %p74
      %s76 = ssub.s32 %s22, %s33
      %s77 = ssub.s32 %s21, %s37
      %s78 = sor.u32 %s76, %s77
      %p79 = scmp.eq.s32.totalorder %s78, 0
      %s81 = sadd.s32 %s80, 1
      %s82 = scalar_select %p79, %s80, %s81
      %p85 = pneg %p79
      %p86 = scmp.eq.s32.totalorder %s12, 7
      %p87 = por %p85, %p86
      %p88 = scmp.ne.s32.totalorder %s80, %s83
      %p89 = scmp.eq.s32.totalorder %s12, 0
      %p90 = por %p88, %p89
      %p91 = scmp.ne.s32.totalorder %s80, %s83
      %p92 = scmp.eq.s32.totalorder %s17, 7
      %p93 = por %p91, %p92
      %p94 = scmp.ne.s32.totalorder %s83, %s84
      %p95 = scmp.eq.s32.totalorder %s17, 0
      %p96 = por %p94, %p95
      %p97 = scmp.ne.s32.totalorder %s83, %s84
      %p98 = scmp.eq.s32.totalorder %s18, 7
      %p99 = por %p97, %p98
      %p101 = scmp.ne.s32.totalorder %s84, %s100
      %p102 = scmp.eq.s32.totalorder %s18, 0
      %p103 = por %p101, %p102
      %s104 = ssub.s32 %s21, %s37
      %p105 = scmp.eq.s32.totalorder %s104, 0
      %s107 = sadd.s32 %s106, 1
      %s108 = scalar_select %p105, %s106, %s107
      %p111 = pneg %p105
      %p112 = scmp.eq.s32.totalorder %s12, 7
      %p113 = por %p111, %p112
      %p114 = scmp.ne.s32.totalorder %s106, %s109
      %p115 = scmp.eq.s32.totalorder %s12, 0
      %p116 = por %p114, %p115
      %p117 = scmp.ne.s32.totalorder %s106, %s109
      %p118 = scmp.eq.s32.totalorder %s17, 7
      %p119 = por %p117, %p118
      %p120 = scmp.ne.s32.totalorder %s109, %s110
      %p121 = scmp.eq.s32.totalorder %s17, 0
      %p122 = por %p120, %p121
      %p123 = scmp.ne.s32.totalorder %s109, %s110
      %p124 = scmp.eq.s32.totalorder %s18, 7
      %p125 = por %p123, %p124
      %p127 = scmp.ne.s32.totalorder %s110, %s126
      %p128 = scmp.eq.s32.totalorder %s18, 0
      %p129 = por %p127, %p128
      %s130 = ssub.s32 %s19, %s45
      %s131 = ssub.s32 %s20, %s41
      %s132 = sor.u32 %s130, %s131
      %s133 = ssub.s32 %s21, %s37
      %s134 = sor.u32 %s132, %s133
      %p135 = scmp.eq.s32.totalorder %s134, 0
      %s137 = sadd.s32 %s136, 1
      %s138 = scalar_select %p135, %s136, %s137
      %p141 = pneg %p135
      %p142 = scmp.eq.s32.totalorder %s12, 7
      %p143 = por %p141, %p142
      %p144 = scmp.ne.s32.totalorder %s136, %s139
      %p145 = scmp.eq.s32.totalorder %s12, 0
      %p146 = por %p144, %p145
      %p147 = scmp.ne.s32.totalorder %s136, %s139
      %p148 = scmp.eq.s32.totalorder %s17, 7
      %p149 = por %p147, %p148
      %p150 = scmp.ne.s32.totalorder %s139, %s140
      %p151 = scmp.eq.s32.totalorder %s17, 0
      %p152 = por %p150, %p151
      %p153 = scmp.ne.s32.totalorder %s139, %s140
      %p154 = scmp.eq.s32.totalorder %s18, 7
      %p155 = por %p153, %p154
      %p157 = scmp.ne.s32.totalorder %s140, %s156
      %p158 = scmp.eq.s32.totalorder %s18, 0
      %p159 = por %p157, %p158
      %p160 = scmp.le.s32.totalorder 1, %s12
      %p161 = scmp.lt.s32.totalorder %s12, 9
      %p162 = pnand %p160, %p161
      %p163 = pneg %p162
      // Predicated region
      $region9: #{multi_head_attention.5} parent=5 // pred_check
        _
      $region10: #{multi_head_attention.5} parent=5 // pred_check_branch
        %165 = sbr.rel (%p162) target = $region12
      $region11: #{multi_head_attention.5} parent=5 // pred_region
        %s166 = ssub.s32 %s12, 1
        // Predicated region
        $region13: #{multi_head_attention.5} parent=11 // pred_check
          %p167 = pneg %p122
        $region14: #{multi_head_attention.5} parent=11 // pred_check_branch
          %169 = sbr.rel (%p167) target = $region16
        $region15: #{multi_head_attention.5} parent=11 // pred_region
          %p170 = scmp.lt.s32.totalorder %s25, 0
          %s171 = scalar_select %p170, %s25, 0
          %s172 = scalar_lea.vmem %s2, %s171
        $region16: #{multi_head_attention.5} parent=11 // pred_fallthru
          _
      $region12: #{multi_head_attention.5} parent=5 // pred_fallthru
        _
      %p173 = scmp.lt.s32.totalorder %s12, 8
      // Predicated region
      $region17: #{multi_head_attention.5} parent=5 // pred_check
        %p174 = pneg %p173
      $region18: #{multi_head_attention.5} parent=5 // pred_check_branch
        %176 = sbr.rel (%p174) target = $region20
      $region19: #{multi_head_attention.5} parent=5 // pred_region
        // Predicated region
        $region21: #{multi_head_attention.5} parent=19 // pred_check
          %p177 = pneg %p62
        $region22: #{multi_head_attention.5} parent=19 // pred_check_branch
          %179 = sbr.rel (%p177) target = $region24
        $region23: #{multi_head_attention.5} parent=19 // pred_region
          %p180 = scmp.lt.s32.totalorder %s19, 1
          %s181 = scalar_select %p180, %s19, 1
          %p182 = scmp.lt.s32.totalorder %s22, 3
          %s183 = scalar_select %p182, %s22, 3
          %p184 = scmp.lt.s32.totalorder %s20, 0
          %s185 = scalar_select %p184, %s20, 0
          %s186 = sadd.s32 %s185, %s183
          %s187 = smul.addr %s181, 4
          %s188 = sadd.s32 %s186, %s187
          %s189 = smul.addr %s188, 8
          %s190 = scalar_lea.vmem %s0, %s189
        $region24: #{multi_head_attention.5} parent=19 // pred_fallthru
          _
        // Predicated region
        $region25: #{multi_head_attention.5} parent=19 // pred_check
          %p191 = pneg %p90
        $region26: #{multi_head_attention.5} parent=19 // pred_check_branch
          %193 = sbr.rel (%p191) target = $region28
        $region27: #{multi_head_attention.5} parent=19 // pred_region
          %p194 = scmp.lt.s32.totalorder %s22, 3
          %s195 = scalar_select %p194, %s22, 3
          %p196 = scmp.lt.s32.totalorder %s21, 0
          %s197 = scalar_select %p196, %s21, 0
          %s198 = sadd.s32 %s197, %s195
          %s199 = smul.addr %s198, 8
          %s200 = scalar_lea.vmem %s1, %s199
        $region28: #{multi_head_attention.5} parent=19 // pred_fallthru
          _
      $region20: #{multi_head_attention.5} parent=5 // pred_fallthru
        _
      %p201 = scmp.le.s32.totalorder 1, %s12
      %p202 = scmp.lt.s32.totalorder %s12, 9
      %p203 = pnand %p201, %p202
      %p204 = pneg %p203
      // Predicated region
      $region29: #{multi_head_attention.5} parent=5 // pred_check
        _
      $region30: #{multi_head_attention.5} parent=5 // pred_check_branch
        %206 = sbr.rel (%p203) target = $region32
      $region31: #{multi_head_attention.5} parent=5 // pred_region
        %s207 = ssub.s32 %s12, 1
        %p208 = scmp.lt.s32.totalorder %s23, 1
        %s209 = scalar_select %p208, %s23, 1
        %p210 = scmp.lt.s32.totalorder %s26, 3
        %s211 = scalar_select %p210, %s26, 3
        %p212 = scmp.lt.s32.totalorder %s24, 0
        %s213 = scalar_select %p212, %s24, 0
        %s214 = sadd.s32 %s213, %s211
        %s215 = smul.addr %s209, 4
        %s216 = sadd.s32 %s214, %s215
        %s217 = smul.addr %s216, 8
        %s218 = scalar_lea.vmem %s0, %s217
        %p219 = pneg %p68
        %p220 = pneg %p65
        %p221 = scmp.lt.s32.totalorder %s26, 3
        %s222 = scalar_select %p221, %s26, 3
        %p223 = scmp.lt.s32.totalorder %s25, 0
        %s224 = scalar_select %p223, %s25, 0
        %s225 = sadd.s32 %s224, %s222
        %s226 = smul.addr %s225, 8
        %s227 = scalar_lea.vmem %s1, %s226
        %p228 = pneg %p96
        %p229 = pneg %p93
        %p230 = scmp.lt.s32.totalorder %s25, 0
        %s231 = scalar_select %p230, %s25, 0
        %s232 = scalar_lea.vmem %s2, %s231
        %p233 = pneg %p122
        %p234 = pneg %p119
        %p235 = pneg %p152
        %p236 = pneg %p149
        %s237 = sand.u32 %s139, 1
        %s238 = scalar_lea.sflag [#allocation4], %s237
        %s239 = sand.u32 %s139, 1
        %s240 = smul.addr %s239, 8
        %s241 = scalar_lea.vmem [#allocation3], %s240
        %p242 = scmp.lt.s32.totalorder %s23, 1
        %s243 = scalar_select %p242, %s23, 1
        %p244 = scmp.lt.s32.totalorder %s26, 3
        %s245 = scalar_select %p244, %s26, 3
        %p246 = scmp.lt.s32.totalorder %s24, 0
        %s247 = scalar_select %p246, %s24, 0
        %s248 = sadd.s32 %s247, %s245
        %s249 = smul.addr %s243, 4
        %s250 = sadd.s32 %s248, %s249
        %s251 = smul.addr %s250, 8
        %s252 = scalar_lea.vmem %s0, %s251
        %p253 = scmp.lt.s32.totalorder %s26, 3
        %s254 = scalar_select %p253, %s26, 3
        %p255 = scmp.lt.s32.totalorder %s25, 0
        %s256 = scalar_select %p255, %s25, 0
        %s257 = sadd.s32 %s256, %s254
        %s258 = smul.addr %s257, 8
        %s259 = scalar_lea.vmem %s1, %s258
        %p260 = scmp.lt.s32.totalorder %s25, 0
        %s261 = scalar_select %p260, %s25, 0
        %s262 = scalar_lea.vmem %s2, %s261
        %p263 = scmp.eq.s32.totalorder %s26, 0
        // Predicated region
        $region33: #{multi_head_attention.5} parent=31 // pred_check
          %p264 = pneg %p263
        $region34: #{multi_head_attention.5} parent=31 // pred_check_branch
          %266 = sbr.rel (%p264) target = $region36
        $region35: #{multi_head_attention.5} parent=31 // pred_region
          %vm267 = vcmask 261120
          %268 = vst.msk [vmem:[#allocation2] sm:$0xff] %vm267, 0.0
        $region36: #{multi_head_attention.5} parent=31 // pred_fallthru
          _
        %v269 = vld [vmem:[#allocation2] sm:$0xff]
        %v270 = vld [vmem:[%s252] sm:$0xff]
        %v271 = vld [vmem:[%s259] sm:$0xff]
        %vm272 = vcmask 64512
        %v274 = vsel %vm272, %v270, 0
        %276 = vmatprep.subr.mxu0 0.0
        %277 = vmatpush1.msra.mxu0 0.0
        %278 = vmatprep.subr.mxu0 0.0
        %279 = vmatpush1.msra.mxu0 0.0
        %280 = vmatprep.subr.mxu0 0.0
        %281 = vmatpush1.msra.mxu0 0.0
        %282 = vmatprep.subr.mxu0 0.0
        %283 = vmatpush1.msra.mxu0 0.0
        %284 = vmatprep.subr.mxu0 0.0
        %285 = vmatpush1.msra.mxu0 0.0
        %286 = vmatprep.subr.mxu0 0.0
        %287 = vmatpush1.msra.mxu0 0.0
        %288 = vmatprep.subr.mxu0 0.0
        %289 = vmatpush1.msra.mxu0 0.0
        %290 = vmatprep.subr.mxu0 0.0
        %291 = vmatpush1.msra.mxu0 0.0
        %292 = vmatprep.subr.mxu0 0.0
        %293 = vmatpush1.msra.mxu0 0.0
        %294 = vmatprep.subr.mxu0 0.0
        %295 = vmatpush1.msra.mxu0 0.0
        %296 = vmatprep.subr.mxu0 0.0
        %297 = vmatpush1.msra.mxu0 0.0
        %298 = vmatprep.subr.mxu0 0.0
        %299 = vmatpush1.msra.mxu0 0.0
        %300 = vmatprep.subr.mxu0 0.0
        %301 = vmatpush1.msra.mxu0 0.0
        %302 = vmatprep.subr.mxu0 0.0
        %303 = vmatpush1.msra.mxu0 0.0
        %304 = vmatprep.subr.mxu0 0.0
        %305 = vmatpush1.msra.mxu0 0.0
        %306 = vmatprep.subr.mxu0 0.0
        %307 = vmatpush1.msra.mxu0 %v271
        %308 = vmatprep.subr.mxu0 0.0
        %309 = vmatpush2.msra.mxu0 0.0
        %310 = vmatprep.subr.mxu0 0.0
        %311 = vmatpush2.msra.mxu0 0.0
        %312 = vmatprep.subr.mxu0 0.0
        %313 = vmatpush2.msra.mxu0 0.0
        %314 = vmatprep.subr.mxu0 0.0
        %315 = vmatpush2.msra.mxu0 0.0
        %316 = vmatprep.subr.mxu0 0.0
        %317 = vmatpush2.msra.mxu0 0.0
        %318 = vmatprep.subr.mxu0 0.0
        %319 = vmatpush2.msra.mxu0 0.0
        %320 = vmatprep.subr.mxu0 0.0
        %321 = vmatpush2.msra.mxu0 0.0
        %322 = vmatprep.subr.mxu0 0.0
        %323 = vmatpush2.msra.mxu0 0.0
        %324 = vmatprep.subr.mxu0 0.0
        %325 = vmatpush2.msra.mxu0 0.0
        %326 = vmatprep.subr.mxu0 0.0
        %327 = vmatpush2.msra.mxu0 0.0
        %328 = vmatprep.subr.mxu0 0.0
        %329 = vmatpush2.msra.mxu0 0.0
        %330 = vmatprep.subr.mxu0 0.0
        %331 = vmatpush2.msra.mxu0 0.0
        %332 = vmatprep.subr.mxu0 0.0
        %333 = vmatpush2.msra.mxu0 0.0
        %334 = vmatprep.subr.mxu0 0.0
        %335 = vmatpush2.msra.mxu0 0.0
        %336 = vmatprep.subr.mxu0 0.0
        %337 = vmatpush2.msra.mxu0 0.0
        %338 = vmatprep.subr.mxu0 0.0
        %339 = vmatpush2.msra.mxu0 0.0
        %340 = vmatprep.mubr.f32.mxu0 0.0
        %341 = vmatmul.mubr.f32.gmra.mxu0 %v274
        %v342 = vpop.f32.mrf.mxu0
        %v343 = vadd.f32 0.0, %v342
        %v344 = vpop.f32.mrf.mxu0
        %345 = vdwg.mxu0
        %v346 = vadd.f32 %v269, %v343
        %vm347 = vcmask 261120
        %348 = vst.msk [vmem:[#allocation2] sm:$0xff] %vm347, %v346
        %p349 = scmp.eq.s32.totalorder %s26, 3
        // Predicated region
        $region37: #{multi_head_attention.5} parent=31 // pred_check
          %p350 = pneg %p349
        $region38: #{multi_head_attention.5} parent=31 // pred_check_branch
          %352 = sbr.rel (%p350) target = $region40
        $region39: #{multi_head_attention.5} parent=31 // pred_region
          %v353 = vld [vmem:[#allocation2] sm:$0xff]
          %v354 = vld [vmem:[%s262] sm:$0x1]
          %v356 = vlaneseq
          %v357 = vshrl.u32 %v356, 7
          %v358 = vsub.s32 0, %v357
          %v359 = vrot.slane %v354, %v358
          %v361 = vadd.f32 %v353, %v359
          %362 = vst.msk [vmem:[%s241] sm:$0xff] %vm347, %v361
        $region40: #{multi_head_attention.5} parent=31 // pred_fallthru
          _
        %s363 = sand.u32 %s139, 1
        %s364 = scalar_lea.sflag [#allocation4], %s363
        %s365 = sand.u32 %s139, 1
        %s366 = smul.addr %s365, 8
        %s367 = scalar_lea.vmem [#allocation3], %s366
        // Predicated region
        $region41: #{multi_head_attention.5} parent=31 // pred_check
          %p368 = pneg %p149
        $region42: #{multi_head_attention.5} parent=31 // pred_check_branch
          %370 = sbr.rel (%p368) target = $region44
        $region43: #{multi_head_attention.5} parent=31 // pred_region
          %s372 = ssub.s32 128, 128
          %373 = vsyncadd %s364, %s372
          %s374 = sadd.s32 %s25, %s24
          %s375 = sadd.s32 %s374, %s23
          %s376 = smul.addr %s375, 128
          %s377 = scalar_lea.hbm %s3, %s376
          %s379 = sshll.u32 %s367, 4
          %s380 = int_to_ptr.vmem [resolvable:$true] %s379
          %382 = dma.vmem_to_hbm [thread:$0]  %s380, 128, %s377, %s364
        $region44: #{multi_head_attention.5} parent=31 // pred_fallthru
          _
      $region32: #{multi_head_attention.5} parent=5 // pred_fallthru
        _
      %p383 = scmp.le.s32.totalorder 2, %s12
      // Predicated region
      $region45: #{multi_head_attention.5} parent=5 // pred_check
        %p384 = pneg %p383
      $region46: #{multi_head_attention.5} parent=5 // pred_check_branch
        %386 = sbr.rel (%p384) target = $region48
      $region47: #{multi_head_attention.5} parent=5 // pred_region
        %s387 = ssub.s32 %s12, 2
        // Predicated region
        $region49: #{multi_head_attention.5} parent=47 // pred_check
          %p388 = pneg %p155
        $region50: #{multi_head_attention.5} parent=47 // pred_check_branch
          %390 = sbr.rel (%p388) target = $region52
        $region51: #{multi_head_attention.5} parent=47 // pred_region
          %s391 = sand.u32 %s140, 1
          %s392 = scalar_lea.sflag [#allocation4], %s391
          %s393 = sand.u32 %s140, 1
          %s394 = smul.addr %s393, 8
          %s395 = scalar_lea.vmem [#allocation3], %s394
          %396 = dma.done %s392, 128
        $region52: #{multi_head_attention.5} parent=47 // pred_fallthru
          _
      $region48: #{multi_head_attention.5} parent=5 // pred_fallthru
        _
    $region6: #{multi_head_attention.5} parent=1 // loop_footer
      %s16 = sadd.s32 1, %s12
    $region7: #{multi_head_attention.5} parent=1 // loop_footer_branch
      %11 = sbr.rel target = $region3
    $region8: #{multi_head_attention.5} parent=1 // loop_exit
      _
    %397 = vsyncpa [#allocation4], 1
    %s398 = scalar_lea.sflag [#allocation4], 1
    %399 = vsyncpa %s398, 1

// kernel: multi_head_attention.4
$region0: #{multi_head_attention.4}
  #allocation0 [shape = 'u32[]', space=smem, size = 0x4, offset = 0x4, fixed_abs, tag = 'smem constant byte address 0x4 - core index']
  #allocation1 [shape = 'u32[144,128]{1,0:T(1,128)}', space=vmem, size = 0x12000, scoped, tag = 'internal scratch']
  #allocation2 [shape = 'f32[8,1]{1,0:T(8,128)}', space=vmem, size = 0x1000, scoped, tag = 'scratch operand']
  #allocation3 [shape = 'f32[8,1]{1,0:T(8,128)}', space=vmem, size = 0x1000, scoped, tag = 'scratch operand']
  #allocation4 [shape = 'f32[8,8]{1,0:T(8,128)}', space=vmem, size = 0x1000, scoped, tag = 'scratch operand']
  %s0 = inlined_call_operand.vmem [shape: f32[2,3,4,8,8], index: 0, kind: input, shape index: {}, may-alias: {0,1,2}]
  %s1 = inlined_call_operand.vmem [shape: f32[2,3,4,8,8], index: 1, kind: input, shape index: {}, may-alias: {0,1,2}]
  %s2 = inlined_call_operand.vmem [shape: f32[2,3,4,8,8], index: 2, kind: input, shape index: {}, may-alias: {0,1,2}]
  %s3 = inlined_call_operand.vmem [shape: f32[2,4,8,8], index: 3, kind: output, shape index: {}]
  %s4 = sld [smem:[#allocation0]]
  $region53: #{multi_head_attention.4} parent=0
    _
  %s6 = ssub.s32 1, %s4
  %s7 = scalar_select 0, %s6, %s4
  loop: start=0, step=1, limit=10
  $region2: #{multi_head_attention.4} parent=0 // loop_pre_header
    _
  $region3: #{multi_head_attention.4} parent=0 // loop_header
    %s9 = sphi 0, %s13
    %p10 = scmp.ge.s32.totalorder %s9, 10
    %s16 = sphi 0, %s42
    %s17 = sphi 0, %s38
    %s18 = sphi 0, %s34
    %s19 = sphi 0, %s30
    %s20 = sphi 0, %s16
    %s21 = sphi 0, %s17
    %s22 = sphi 0, %s18
    %s23 = sphi 0, %s19
    %s24 = sphi 0, %s20
    %s25 = sphi 0, %s21
    %s26 = sphi 0, %s22
    %s27 = sphi 0, %s23
    %s49 = sphi 0, %s51
    %s52 = sphi 0, %s49
    %s53 = sphi 0, %s52
    %s69 = sphi 0, %s53
    %s79 = sphi 0, %s81
    %s82 = sphi 0, %s79
    %s83 = sphi 0, %s82
    %s99 = sphi 0, %s83
    %s109 = sphi 0, %s111
    %s112 = sphi 0, %s109
    %s113 = sphi 0, %s112
    %s129 = sphi 0, %s113
    %s139 = sphi 0, %s141
    %s142 = sphi 0, %s139
    %s143 = sphi 0, %s142
    %s159 = sphi 0, %s143
  $region4: #{multi_head_attention.4} parent=0 // loop_header_branch
    %12 = sbr.rel (%p10) target = $region8
  $region5: #{multi_head_attention.4} parent=0 // loop_body
    %s14 = ssub.s32 %s9, 1
    %s15 = ssub.s32 %s9, 2
    %s28 = sadd.s32 1, %s19
    %p29 = scmp.ge.s32.totalorder %s28, 1
    %s30 = scalar_select %p29, 0, %s28
    %s31 = sadd.s32 1, %s18
    %s32 = scalar_select %p29, %s31, %s18
    %p33 = scmp.ge.s32.totalorder %s32, 1
    %s34 = scalar_select %p33, 0, %s32
    %s35 = sadd.s32 1, %s17
    %s36 = scalar_select %p33, %s35, %s17
    %p37 = scmp.ge.s32.totalorder %s36, 4
    %s38 = scalar_select %p37, 0, %s36
    %s39 = sadd.s32 1, %s16
    %s40 = scalar_select %p37, %s39, %s16
    %p41 = scmp.ge.s32.totalorder %s40, 2
    %s42 = scalar_select %p41, 0, %s40
    %s43 = ssub.s32 %s16, %s42
    %s44 = ssub.s32 %s17, %s38
    %s45 = sor.u32 %s43, %s44
    %s46 = ssub.s32 %s18, %s34
    %s47 = sor.u32 %s45, %s46
    %p48 = scmp.eq.s32.totalorder %s47, 0
    %s50 = sadd.s32 %s49, 1
    %s51 = scalar_select %p48, %s49, %s50
    %p54 = pneg %p48
    %p55 = scmp.eq.s32.totalorder %s9, 7
    %p56 = por %p54, %p55
    %p57 = scmp.ne.s32.totalorder %s49, %s52
    %p58 = scmp.eq.s32.totalorder %s9, 0
    %p59 = por %p57, %p58
    %p60 = scmp.ne.s32.totalorder %s49, %s52
    %p61 = scmp.eq.s32.totalorder %s14, 7
    %p62 = por %p60, %p61
    %p63 = scmp.ne.s32.totalorder %s52, %s53
    %p64 = scmp.eq.s32.totalorder %s14, 0
    %p65 = por %p63, %p64
    %p66 = scmp.ne.s32.totalorder %s52, %s53
    %p67 = scmp.eq.s32.totalorder %s15, 7
    %p68 = por %p66, %p67
    %p70 = scmp.ne.s32.totalorder %s53, %s69
    %p71 = scmp.eq.s32.totalorder %s15, 0
    %p72 = por %p70, %p71
    %s73 = ssub.s32 %s16, %s42
    %s74 = ssub.s32 %s17, %s38
    %s75 = sor.u32 %s73, %s74
    %s76 = ssub.s32 %s19, %s30
    %s77 = sor.u32 %s75, %s76
    %p78 = scmp.eq.s32.totalorder %s77, 0
    %s80 = sadd.s32 %s79, 1
    %s81 = scalar_select %p78, %s79, %s80
    %p84 = pneg %p78
    %p85 = scmp.eq.s32.totalorder %s9, 7
    %p86 = por %p84, %p85
    %p87 = scmp.ne.s32.totalorder %s79, %s82
    %p88 = scmp.eq.s32.totalorder %s9, 0
    %p89 = por %p87, %p88
    %p90 = scmp.ne.s32.totalorder %s79, %s82
    %p91 = scmp.eq.s32.totalorder %s14, 7
    %p92 = por %p90, %p91
    %p93 = scmp.ne.s32.totalorder %s82, %s83
    %p94 = scmp.eq.s32.totalorder %s14, 0
    %p95 = por %p93, %p94
    %p96 = scmp.ne.s32.totalorder %s82, %s83
    %p97 = scmp.eq.s32.totalorder %s15, 7
    %p98 = por %p96, %p97
    %p100 = scmp.ne.s32.totalorder %s83, %s99
    %p101 = scmp.eq.s32.totalorder %s15, 0
    %p102 = por %p100, %p101
    %s103 = ssub.s32 %s16, %s42
    %s104 = ssub.s32 %s17, %s38
    %s105 = sor.u32 %s103, %s104
    %s106 = ssub.s32 %s19, %s30
    %s107 = sor.u32 %s105, %s106
    %p108 = scmp.eq.s32.totalorder %s107, 0
    %s110 = sadd.s32 %s109, 1
    %s111 = scalar_select %p108, %s109, %s110
    %p114 = pneg %p108
    %p115 = scmp.eq.s32.totalorder %s9, 7
    %p116 = por %p114, %p115
    %p117 = scmp.ne.s32.totalorder %s109, %s112
    %p118 = scmp.eq.s32.totalorder %s9, 0
    %p119 = por %p117, %p118
    %p120 = scmp.ne.s32.totalorder %s109, %s112
    %p121 = scmp.eq.s32.totalorder %s14, 7
    %p122 = por %p120, %p121
    %p123 = scmp.ne.s32.totalorder %s112, %s113
    %p124 = scmp.eq.s32.totalorder %s14, 0
    %p125 = por %p123, %p124
    %p126 = scmp.ne.s32.totalorder %s112, %s113
    %p127 = scmp.eq.s32.totalorder %s15, 7
    %p128 = por %p126, %p127
    %p130 = scmp.ne.s32.totalorder %s113, %s129
    %p131 = scmp.eq.s32.totalorder %s15, 0
    %p132 = por %p130, %p131
    %s133 = ssub.s32 %s16, %s42
    %s134 = ssub.s32 %s17, %s38
    %s135 = sor.u32 %s133, %s134
    %s136 = ssub.s32 %s18, %s34
    %s137 = sor.u32 %s135, %s136
    %p138 = scmp.eq.s32.totalorder %s137, 0
    %s140 = sadd.s32 %s139, 1
    %s141 = scalar_select %p138, %s139, %s140
    %p144 = pneg %p138
    %p145 = scmp.eq.s32.totalorder %s9, 7
    %p146 = por %p144, %p145
    %p147 = scmp.ne.s32.totalorder %s139, %s142
    %p148 = scmp.eq.s32.totalorder %s9, 0
    %p149 = por %p147, %p148
    %p150 = scmp.ne.s32.totalorder %s139, %s142
    %p151 = scmp.eq.s32.totalorder %s14, 7
    %p152 = por %p150, %p151
    %p153 = scmp.ne.s32.totalorder %s142, %s143
    %p154 = scmp.eq.s32.totalorder %s14, 0
    %p155 = por %p153, %p154
    %p156 = scmp.ne.s32.totalorder %s142, %s143
    %p157 = scmp.eq.s32.totalorder %s15, 7
    %p158 = por %p156, %p157
    %p160 = scmp.ne.s32.totalorder %s143, %s159
    %p161 = scmp.eq.s32.totalorder %s15, 0
    %p162 = por %p160, %p161
    %p163 = scmp.le.s32.totalorder 1, %s9
    %p164 = scmp.lt.s32.totalorder %s9, 9
    %p165 = pnand %p163, %p164
    %p166 = pneg %p165
    // Predicated region
    $region9: #{multi_head_attention.4} parent=5 // pred_check
      _
    $region10: #{multi_head_attention.4} parent=5 // pred_check_branch
      %168 = sbr.rel (%p165) target = $region12
    $region11: #{multi_head_attention.4} parent=5 // pred_region
      %s169 = ssub.s32 %s9, 1
    $region12: #{multi_head_attention.4} parent=5 // pred_fallthru
      _
    %p170 = scmp.lt.s32.totalorder %s9, 8
    // Predicated region
    $region13: #{multi_head_attention.4} parent=5 // pred_check
      %p171 = pneg %p170
    $region14: #{multi_head_attention.4} parent=5 // pred_check_branch
      %173 = sbr.rel (%p171) target = $region16
    $region15: #{multi_head_attention.4} parent=5 // pred_region
      // Predicated region
      $region17: #{multi_head_attention.4} parent=15 // pred_check
        %p174 = pneg %p59
      $region18: #{multi_head_attention.4} parent=15 // pred_check_branch
        %176 = sbr.rel (%p174) target = $region20
      $region19: #{multi_head_attention.4} parent=15 // pred_region
        %p177 = scmp.lt.s32.totalorder %s16, 1
        %s178 = scalar_select %p177, %s16, 1
        %p179 = scmp.lt.s32.totalorder %s17, 3
        %s180 = scalar_select %p179, %s17, 3
        %p181 = scmp.lt.s32.totalorder %s18, 0
        %s182 = scalar_select %p181, %s18, 0
        %s183 = sadd.s32 %s182, %s180
        %s184 = smul.addr %s178, 12
        %s185 = sadd.s32 %s183, %s184
        %s186 = smul.addr %s185, 8
        %s187 = scalar_lea.vmem %s0, %s186
      $region20: #{multi_head_attention.4} parent=15 // pred_fallthru
        _
      // Predicated region
      $region21: #{multi_head_attention.4} parent=15 // pred_check
        %p188 = pneg %p89
      $region22: #{multi_head_attention.4} parent=15 // pred_check_branch
        %190 = sbr.rel (%p188) target = $region24
      $region23: #{multi_head_attention.4} parent=15 // pred_region
        %p191 = scmp.lt.s32.totalorder %s16, 1
        %s192 = scalar_select %p191, %s16, 1
        %p193 = scmp.lt.s32.totalorder %s17, 3
        %s194 = scalar_select %p193, %s17, 3
        %p195 = scmp.lt.s32.totalorder %s19, 0
        %s196 = scalar_select %p195, %s19, 0
        %s197 = sadd.s32 %s196, %s194
        %s198 = sadd.s32 %s197, 4
        %s199 = smul.addr %s192, 12
        %s200 = sadd.s32 %s198, %s199
        %s201 = smul.addr %s200, 8
        %s202 = scalar_lea.vmem %s1, %s201
      $region24: #{multi_head_attention.4} parent=15 // pred_fallthru
        _
      // Predicated region
      $region25: #{multi_head_attention.4} parent=15 // pred_check
        %p203 = pneg %p119
      $region26: #{multi_head_attention.4} parent=15 // pred_check_branch
        %205 = sbr.rel (%p203) target = $region28
      $region27: #{multi_head_attention.4} parent=15 // pred_region
        %p206 = scmp.lt.s32.totalorder %s16, 1
        %s207 = scalar_select %p206, %s16, 1
        %p208 = scmp.lt.s32.totalorder %s17, 3
        %s209 = scalar_select %p208, %s17, 3
        %p210 = scmp.lt.s32.totalorder %s19, 0
        %s211 = scalar_select %p210, %s19, 0
        %s212 = sadd.s32 %s211, %s209
        %s213 = sadd.s32 %s212, 8
        %s214 = smul.addr %s207, 12
        %s215 = sadd.s32 %s213, %s214
        %s216 = smul.addr %s215, 8
        %s217 = scalar_lea.vmem %s2, %s216
      $region28: #{multi_head_attention.4} parent=15 // pred_fallthru
        _
    $region16: #{multi_head_attention.4} parent=5 // pred_fallthru
      _
    %p218 = scmp.le.s32.totalorder 1, %s9
    %p219 = scmp.lt.s32.totalorder %s9, 9
    %p220 = pnand %p218, %p219
    %p221 = pneg %p220
    // Predicated region
    $region29: #{multi_head_attention.4} parent=5 // pred_check
      _
    $region30: #{multi_head_attention.4} parent=5 // pred_check_branch
      %223 = sbr.rel (%p220) target = $region32
    $region31: #{multi_head_attention.4} parent=5 // pred_region
      %s224 = ssub.s32 %s9, 1
      %p225 = scmp.lt.s32.totalorder %s20, 1
      %s226 = scalar_select %p225, %s20, 1
      %p227 = scmp.lt.s32.totalorder %s21, 3
      %s228 = scalar_select %p227, %s21, 3
      %p229 = scmp.lt.s32.totalorder %s22, 0
      %s230 = scalar_select %p229, %s22, 0
      %s231 = sadd.s32 %s230, %s228
      %s232 = smul.addr %s226, 12
      %s233 = sadd.s32 %s231, %s232
      %s234 = smul.addr %s233, 8
      %s235 = scalar_lea.vmem %s0, %s234
      %p236 = pneg %p65
      %p237 = pneg %p62
      %p238 = scmp.lt.s32.totalorder %s20, 1
      %s239 = scalar_select %p238, %s20, 1
      %p240 = scmp.lt.s32.totalorder %s21, 3
      %s241 = scalar_select %p240, %s21, 3
      %p242 = scmp.lt.s32.totalorder %s23, 0
      %s243 = scalar_select %p242, %s23, 0
      %s244 = sadd.s32 %s243, %s241
      %s245 = sadd.s32 %s244, 4
      %s246 = smul.addr %s239, 12
      %s247 = sadd.s32 %s245, %s246
      %s248 = smul.addr %s247, 8
      %s249 = scalar_lea.vmem %s1, %s248
      %p250 = pneg %p95
      %p251 = pneg %p92
      %p252 = scmp.lt.s32.totalorder %s20, 1
      %s253 = scalar_select %p252, %s20, 1
      %p254 = scmp.lt.s32.totalorder %s21, 3
      %s255 = scalar_select %p254, %s21, 3
      %p256 = scmp.lt.s32.totalorder %s23, 0
      %s257 = scalar_select %p256, %s23, 0
      %s258 = sadd.s32 %s257, %s255
      %s259 = sadd.s32 %s258, 8
      %s260 = smul.addr %s253, 12
      %s261 = sadd.s32 %s259, %s260
      %s262 = smul.addr %s261, 8
      %s263 = scalar_lea.vmem %s2, %s262
      %p264 = pneg %p125
      %p265 = pneg %p122
      %p266 = pneg %p155
      %p267 = pneg %p152
      %p268 = scmp.lt.s32.totalorder %s20, 1
      %s269 = scalar_select %p268, %s20, 1
      %p270 = scmp.lt.s32.totalorder %s21, 3
      %s271 = scalar_select %p270, %s21, 3
      %p272 = scmp.lt.s32.totalorder %s22, 0
      %s273 = scalar_select %p272, %s22, 0
      %s274 = sadd.s32 %s273, %s271
      %s275 = smul.addr %s269, 4
      %s276 = sadd.s32 %s274, %s275
      %s277 = smul.addr %s276, 8
      %s278 = scalar_lea.vmem %s3, %s277
      %p279 = scmp.lt.s32.totalorder %s20, 1
      %s280 = scalar_select %p279, %s20, 1
      %p281 = scmp.lt.s32.totalorder %s21, 3
      %s282 = scalar_select %p281, %s21, 3
      %p283 = scmp.lt.s32.totalorder %s22, 0
      %s284 = scalar_select %p283, %s22, 0
      %s285 = sadd.s32 %s284, %s282
      %s286 = smul.addr %s280, 12
      %s287 = sadd.s32 %s285, %s286
      %s288 = smul.addr %s287, 8
      %s289 = scalar_lea.vmem %s0, %s288
      %p290 = scmp.lt.s32.totalorder %s20, 1
      %s291 = scalar_select %p290, %s20, 1
      %p292 = scmp.lt.s32.totalorder %s21, 3
      %s293 = scalar_select %p292, %s21, 3
      %p294 = scmp.lt.s32.totalorder %s23, 0
      %s295 = scalar_select %p294, %s23, 0
      %s296 = sadd.s32 %s295, %s293
      %s297 = sadd.s32 %s296, 4
      %s298 = smul.addr %s291, 12
      %s299 = sadd.s32 %s297, %s298
      %s300 = smul.addr %s299, 8
      %s301 = scalar_lea.vmem %s1, %s300
      %p302 = scmp.lt.s32.totalorder %s20, 1
      %s303 = scalar_select %p302, %s20, 1
      %p304 = scmp.lt.s32.totalorder %s21, 3
      %s305 = scalar_select %p304, %s21, 3
      %p306 = scmp.lt.s32.totalorder %s23, 0
      %s307 = scalar_select %p306, %s23, 0
      %s308 = sadd.s32 %s307, %s305
      %s309 = sadd.s32 %s308, 8
      %s310 = smul.addr %s303, 12
      %s311 = sadd.s32 %s309, %s310
      %s312 = smul.addr %s311, 8
      %s313 = scalar_lea.vmem %s2, %s312
      %p314 = scmp.lt.s32.totalorder %s20, 1
      %s315 = scalar_select %p314, %s20, 1
      %p316 = scmp.lt.s32.totalorder %s21, 3
      %s317 = scalar_select %p316, %s21, 3
      %p318 = scmp.lt.s32.totalorder %s22, 0
      %s319 = scalar_select %p318, %s22, 0
      %s320 = sadd.s32 %s319, %s317
      %s321 = smul.addr %s315, 4
      %s322 = sadd.s32 %s320, %s321
      %s323 = smul.addr %s322, 8
      %s324 = scalar_lea.vmem %s3, %s323
      %p325 = scmp.eq.s32.totalorder %s23, 0
      // Predicated region
      $region33: #{multi_head_attention.4} parent=31 // pred_check
        %p326 = pneg %p325
      $region34: #{multi_head_attention.4} parent=31 // pred_check_branch
        %328 = sbr.rel (%p326) target = $region36
      $region35: #{multi_head_attention.4} parent=31 // pred_region
        %vm329 = vcmask 7168
        %330 = vst.msk [vmem:[#allocation2] sm:$0xff] %vm329, -inf
        %331 = vst.msk [vmem:[#allocation3] sm:$0xff] %vm329, 0.0
        %vm332 = vcmask 64512
        %333 = vst.msk [vmem:[#allocation4] sm:$0xff] %vm332, 0.0
      $region36: #{multi_head_attention.4} parent=31 // pred_fallthru
        _
      %v334 = vld [vmem:[%s289] sm:$0xff]
      %v335 = vmul.f32 %v334, 0.35355338
      %v336 = vld [vmem:[%s301] sm:$0xff]
      %vm337 = vcmask 64512
      %v339 = vsel %vm337, %v335, 0
      %v342 = vsel %vm337, %v336, 0
      %344 = vmatprep.subr.mxu0 0.0
      %345 = vmatpush1.xpose.msra.mxu0 0.0
      %346 = vmatprep.subr.mxu0 0.0
      %347 = vmatpush1.xpose.msra.mxu0 0.0
      %348 = vmatprep.subr.mxu0 0.0
      %349 = vmatpush1.xpose.msra.mxu0 0.0
      %350 = vmatprep.subr.mxu0 0.0
      %351 = vmatpush1.xpose.msra.mxu0 0.0
      %352 = vmatprep.subr.mxu0 0.0
      %353 = vmatpush1.xpose.msra.mxu0 0.0
      %354 = vmatprep.subr.mxu0 0.0
      %355 = vmatpush1.xpose.msra.mxu0 0.0
      %356 = vmatprep.subr.mxu0 0.0
      %357 = vmatpush1.xpose.msra.mxu0 0.0
      %358 = vmatprep.subr.mxu0 0.0
      %359 = vmatpush1.xpose.msra.mxu0 0.0
      %360 = vmatprep.subr.mxu0 0.0
      %361 = vmatpush1.xpose.msra.mxu0 0.0
      %362 = vmatprep.subr.mxu0 0.0
      %363 = vmatpush1.xpose.msra.mxu0 0.0
      %364 = vmatprep.subr.mxu0 0.0
      %365 = vmatpush1.xpose.msra.mxu0 0.0
      %366 = vmatprep.subr.mxu0 0.0
      %367 = vmatpush1.xpose.msra.mxu0 0.0
      %368 = vmatprep.subr.mxu0 0.0
      %369 = vmatpush1.xpose.msra.mxu0 0.0
      %370 = vmatprep.subr.mxu0 0.0
      %371 = vmatpush1.xpose.msra.mxu0 0.0
      %372 = vmatprep.subr.mxu0 0.0
      %373 = vmatpush1.xpose.msra.mxu0 0.0
      %374 = vmatprep.subr.mxu0 0.0
      %375 = vmatpush1.xpose.msra.mxu0 %v342
      %376 = vmatprep.subr.mxu0 0.0
      %377 = vmatpush2.xpose.msra.mxu0 0.0
      %378 = vmatprep.subr.mxu0 0.0
      %379 = vmatpush2.xpose.msra.mxu0 0.0
      %380 = vmatprep.subr.mxu0 0.0
      %381 = vmatpush2.xpose.msra.mxu0 0.0
      %382 = vmatprep.subr.mxu0 0.0
      %383 = vmatpush2.xpose.msra.mxu0 0.0
      %384 = vmatprep.subr.mxu0 0.0
      %385 = vmatpush2.xpose.msra.mxu0 0.0
      %386 = vmatprep.subr.mxu0 0.0
      %387 = vmatpush2.xpose.msra.mxu0 0.0
      %388 = vmatprep.subr.mxu0 0.0
      %389 = vmatpush2.xpose.msra.mxu0 0.0
      %390 = vmatprep.subr.mxu0 0.0
      %391 = vmatpush2.xpose.msra.mxu0 0.0
      %392 = vmatprep.subr.mxu0 0.0
      %393 = vmatpush2.xpose.msra.mxu0 0.0
      %394 = vmatprep.subr.mxu0 0.0
      %395 = vmatpush2.xpose.msra.mxu0 0.0
      %396 = vmatprep.subr.mxu0 0.0
      %397 = vmatpush2.xpose.msra.mxu0 0.0
      %398 = vmatprep.subr.mxu0 0.0
      %399 = vmatpush2.xpose.msra.mxu0 0.0
      %400 = vmatprep.subr.mxu0 0.0
      %401 = vmatpush2.xpose.msra.mxu0 0.0
      %402 = vmatprep.subr.mxu0 0.0
      %403 = vmatpush2.xpose.msra.mxu0 0.0
      %404 = vmatprep.subr.mxu0 0.0
      %405 = vmatpush2.xpose.msra.mxu0 0.0
      %406 = vmatprep.subr.mxu0 0.0
      %407 = vmatpush2.xpose.msra.mxu0 0.0
      %408 = vmatprep.mubr.f32.mxu0 0.0
      %409 = vmatmul.mubr.f32.gmra.mxu0 %v339
      %v410 = vpop.f32.mrf.mxu0
      %v411 = vadd.f32 0.0, %v410
      %v412 = vpop.f32.mrf.mxu0
      %413 = vdwg.mxu0
      %v414 = vld [vmem:[#allocation2] sm:$0xff]
      %v415 = vsel %vm337, %v411, -inf
      %416 = vmax.xlane.f32.xlu0 %v415
      %v417 = vpop.xlane.xlu0 %416
      %v418 = vmax.f32 %v414, %v417
      %v419 = vsub.f32 %v414, %v418
      %v420 = vmul.f32 %v419, 1.442695
      %v421 = vpow.pop %v420
      %423 = vset.pattern.permute.xlu0 0
      %424 = vperm.xlu0 %423, %v418
      %v425 = vpop.permute.xlu0 %424
      %v427 = vsub.f32 %v411, %v425
      %v428 = vmul.f32 %v427, 1.442695
      %v429 = vpow.pop %v428
      %v430 = vld [vmem:[#allocation3] sm:$0xff]
      %v431 = vmul.f32 %v421, %v430
      %v432 = vsel %vm337, %v429, 0.0
      %433 = vadd.xlane.f32.xlu0 %v432
      %v434 = vpop.xlane.xlu0 %433
      %v435 = vadd.f32 %v431, %v434
      %vm436 = vcmask 7168
      %437 = vst.msk [vmem:[#allocation3] sm:$0xff] %vm436, %v435
      %v438 = vld [vmem:[#allocation4] sm:$0xff]
      %440 = vset.pattern.permute.xlu0 0
      %441 = vperm.xlu0 %440, %v421
      %v442 = vpop.permute.xlu0 %441
      %v444 = vmul.f32 %v442, %v438
      %v445 = vld [vmem:[%s313] sm:$0xff]
      %v447 = vsel %vm337, %v429, 0
      %449 = vmatprep.subr.mxu0 0.0
      %450 = vmatpush1.msra.mxu0 0.0
      %451 = vmatprep.subr.mxu0 0.0
      %452 = vmatpush1.msra.mxu0 0.0
      %453 = vmatprep.subr.mxu0 0.0
      %454 = vmatpush1.msra.mxu0 0.0
      %455 = vmatprep.subr.mxu0 0.0
      %456 = vmatpush1.msra.mxu0 0.0
      %457 = vmatprep.subr.mxu0 0.0
      %458 = vmatpush1.msra.mxu0 0.0
      %459 = vmatprep.subr.mxu0 0.0
      %460 = vmatpush1.msra.mxu0 0.0
      %461 = vmatprep.subr.mxu0 0.0
      %462 = vmatpush1.msra.mxu0 0.0
      %463 = vmatprep.subr.mxu0 0.0
      %464 = vmatpush1.msra.mxu0 0.0
      %465 = vmatprep.subr.mxu0 0.0
      %466 = vmatpush1.msra.mxu0 0.0
      %467 = vmatprep.subr.mxu0 0.0
      %468 = vmatpush1.msra.mxu0 0.0
      %469 = vmatprep.subr.mxu0 0.0
      %470 = vmatpush1.msra.mxu0 0.0
      %471 = vmatprep.subr.mxu0 0.0
      %472 = vmatpush1.msra.mxu0 0.0
      %473 = vmatprep.subr.mxu0 0.0
      %474 = vmatpush1.msra.mxu0 0.0
      %475 = vmatprep.subr.mxu0 0.0
      %476 = vmatpush1.msra.mxu0 0.0
      %477 = vmatprep.subr.mxu0 0.0
      %478 = vmatpush1.msra.mxu0 0.0
      %479 = vmatprep.subr.mxu0 0.0
      %480 = vmatpush1.msra.mxu0 %v445
      %481 = vmatprep.subr.mxu0 0.0
      %482 = vmatpush2.msra.mxu0 0.0
      %483 = vmatprep.subr.mxu0 0.0
      %484 = vmatpush2.msra.mxu0 0.0
      %485 = vmatprep.subr.mxu0 0.0
      %486 = vmatpush2.msra.mxu0 0.0
      %487 = vmatprep.subr.mxu0 0.0
      %488 = vmatpush2.msra.mxu0 0.0
      %489 = vmatprep.subr.mxu0 0.0
      %490 = vmatpush2.msra.mxu0 0.0
      %491 = vmatprep.subr.mxu0 0.0
      %492 = vmatpush2.msra.mxu0 0.0
      %493 = vmatprep.subr.mxu0 0.0
      %494 = vmatpush2.msra.mxu0 0.0
      %495 = vmatprep.subr.mxu0 0.0
      %496 = vmatpush2.msra.mxu0 0.0
      %497 = vmatprep.subr.mxu0 0.0
      %498 = vmatpush2.msra.mxu0 0.0
      %499 = vmatprep.subr.mxu0 0.0
      %500 = vmatpush2.msra.mxu0 0.0
      %501 = vmatprep.subr.mxu0 0.0
      %502 = vmatpush2.msra.mxu0 0.0
      %503 = vmatprep.subr.mxu0 0.0
      %504 = vmatpush2.msra.mxu0 0.0
      %505 = vmatprep.subr.mxu0 0.0
      %506 = vmatpush2.msra.mxu0 0.0
      %507 = vmatprep.subr.mxu0 0.0
      %508 = vmatpush2.msra.mxu0 0.0
      %509 = vmatprep.subr.mxu0 0.0
      %510 = vmatpush2.msra.mxu0 0.0
      %511 = vmatprep.subr.mxu0 0.0
      %512 = vmatpush2.msra.mxu0 0.0
      %513 = vmatprep.mubr.f32.mxu0 0.0
      %514 = vmatmul.mubr.f32.gmra.mxu0 %v447
      %v515 = vpop.f32.mrf.mxu0
      %v516 = vadd.f32 0.0, %v515
      %v517 = vpop.f32.mrf.mxu0
      %518 = vdwg.mxu0
      %v519 = vadd.f32 %v444, %v516
      %520 = vst.msk [vmem:[#allocation4] sm:$0xff] %vm337, %v519
      %521 = vst.msk [vmem:[#allocation2] sm:$0xff] %vm436, %v418
      // Predicated region
      $region37: #{multi_head_attention.4} parent=31 // pred_check
        %p522 = pneg %p325
      $region38: #{multi_head_attention.4} parent=31 // pred_check_branch
        %524 = sbr.rel (%p522) target = $region40
      $region39: #{multi_head_attention.4} parent=31 // pred_region
        %v525 = vld [vmem:[#allocation4] sm:$0xff]
        %v526 = vld [vmem:[#allocation3] sm:$0xff]
        %v527 = vrcp.pop %v526
        %529 = vset.pattern.permute.xlu0 0
        %530 = vperm.xlu0 %529, %v527
        %v531 = vpop.permute.xlu0 %530
        %v533 = vmul.f32 %v525, %v531
        %534 = vst.msk [vmem:[%s324] sm:$0xff] %vm337, %v533
      $region40: #{multi_head_attention.4} parent=31 // pred_fallthru
        _
      %p535 = scmp.lt.s32.totalorder %s20, 1
      %s536 = scalar_select %p535, %s20, 1
      %p537 = scmp.lt.s32.totalorder %s21, 3
      %s538 = scalar_select %p537, %s21, 3
      %p539 = scmp.lt.s32.totalorder %s22, 0
      %s540 = scalar_select %p539, %s22, 0
      %s541 = sadd.s32 %s540, %s538
      %s542 = smul.addr %s536, 4
      %s543 = sadd.s32 %s541, %s542
      %s544 = smul.addr %s543, 8
      %s545 = scalar_lea.vmem %s3, %s544
      // Predicated region
      $region41: #{multi_head_attention.4} parent=31 // pred_check
        %p546 = pneg %p152
      $region42: #{multi_head_attention.4} parent=31 // pred_check_branch
        %548 = sbr.rel (%p546) target = $region44
      $region43: #{multi_head_attention.4} parent=31 // pred_region
        _
      $region44: #{multi_head_attention.4} parent=31 // pred_fallthru
        _
    $region32: #{multi_head_attention.4} parent=5 // pred_fallthru
      _
    %p549 = scmp.le.s32.totalorder 2, %s9
    // Predicated region
    $region45: #{multi_head_attention.4} parent=5 // pred_check
      %p550 = pneg %p549
    $region46: #{multi_head_attention.4} parent=5 // pred_check_branch
      %552 = sbr.rel (%p550) target = $region48
    $region47: #{multi_head_attention.4} parent=5 // pred_region
      %s553 = ssub.s32 %s9, 2
      // Predicated region
      $region49: #{multi_head_attention.4} parent=47 // pred_check
        %p554 = pneg %p158
      $region50: #{multi_head_attention.4} parent=47 // pred_check_branch
        %556 = sbr.rel (%p554) target = $region52
      $region51: #{multi_head_attention.4} parent=47 // pred_region
        %p557 = scmp.lt.s32.totalorder %s24, 1
        %s558 = scalar_select %p557, %s24, 1
        %p559 = scmp.lt.s32.totalorder %s25, 3
        %s560 = scalar_select %p559, %s25, 3
        %p561 = scmp.lt.s32.totalorder %s26, 0
        %s562 = scalar_select %p561, %s26, 0
        %s563 = sadd.s32 %s562, %s560
        %s564 = smul.addr %s558, 4
        %s565 = sadd.s32 %s563, %s564
        %s566 = smul.addr %s565, 8
        %s567 = scalar_lea.vmem %s3, %s566
      $region52: #{multi_head_attention.4} parent=47 // pred_fallthru
        _
    $region48: #{multi_head_attention.4} parent=5 // pred_fallthru
      _
  $region6: #{multi_head_attention.4} parent=0 // loop_footer
    %s13 = sadd.s32 1, %s9
  $region7: #{multi_head_attention.4} parent=0 // loop_footer_branch
    %8 = sbr.rel target = $region3
  $region8: #{multi_head_attention.4} parent=0 // loop_exit
    _

</llo_original>
